<compile_context>
chip_gen: v5e
topology: v5e:2x2
jax: 0.10.0
libtpu: 0.0.40
codegen_flags: <defaults>
</compile_context>

<pallas_src>
import functools
import math

import jax
import jax.numpy as jnp
from jax.experimental import pallas as pl
from jax.experimental.pallas import tpu as pltpu


def _mha_kernel(q_ref, k_ref, v_ref,
                wq_ref, wk_ref, wv_ref, wfc_ref,
                bfc_ref, gamma_ref, beta_ref,
                out_ref, attn_ref,
                o_scratch,
                *, n_head, d_k, d_v, eps=1e-6):
    """One grid step = one batch element; all heads handled in-kernel."""
    # ---- pre-LayerNorm on q (f32 stats, EUP rsqrt) ----
    q = q_ref[0]                                               # (Lq, Dm) f32
    mean = jnp.mean(q, axis=-1, keepdims=True)
    var = jnp.mean(jnp.square(q - mean), axis=-1, keepdims=True)
    qn = (q - mean) * jax.lax.rsqrt(var + eps)
    qn = (qn * gamma_ref[...] + beta_ref[...]).astype(jnp.bfloat16)

    kb = k_ref[0]                                              # (Lk, Dm) bf16 (cast in wrapper)
    vb = v_ref[0]                                              # (Lv, Dm) bf16

    # ---- fused all-head projections: one lane-dense MXU matmul each ----
    # wq is pre-scaled by 1/sqrt(d_k) in the wrapper.
    qp = jnp.dot(qn, wq_ref[...], preferred_element_type=jnp.float32)   # (Lq, H*d_k)
    kp = jnp.dot(kb, wk_ref[...], preferred_element_type=jnp.float32)   # (Lk, H*d_k)
    vp = jnp.dot(vb, wv_ref[...], preferred_element_type=jnp.float32)   # (Lv, H*d_v)
    qp = qp.astype(jnp.bfloat16)
    kp = kp.astype(jnp.bfloat16)
    vp = vp.astype(jnp.bfloat16)

    # ---- per-head scaled dot-product attention (short unrolled loop) ----
    for h in range(n_head):
        qh = qp[:, h * d_k:(h + 1) * d_k]                      # (Lq, d_k) bf16
        kh = kp[:, h * d_k:(h + 1) * d_k]                      # (Lk, d_k) bf16
        vh = vp[:, h * d_v:(h + 1) * d_v]                      # (Lv, d_v) bf16

        s = jax.lax.dot_general(
            qh, kh,
            dimension_numbers=(((1,), (1,)), ((), ())),        # 'qd,kd->qk'
            preferred_element_type=jnp.float32)                # (Lq, Lk) f32
        s = s - jnp.max(s, axis=-1, keepdims=True)
        e = jnp.exp(s)
        denom = jnp.sum(e, axis=-1, keepdims=True)
        a = e * (1.0 / denom)                                  # exact recip: attn is returned
        attn_ref[0, h] = a

        o_h = jnp.dot(a.astype(jnp.bfloat16), vh,
                      preferred_element_type=jnp.float32)      # (Lq, d_v)
        o_scratch[:, h * d_v:(h + 1) * d_v] = o_h.astype(jnp.bfloat16)

    # ---- single big-K fc matmul + bias + residual ----
    proj = jnp.dot(o_scratch[...], wfc_ref[...],
                   preferred_element_type=jnp.float32)         # (Lq, Dm) f32
    out_ref[0] = proj + bfc_ref[...] + q_ref[0]


def multi_head_attention(q, k, v, params, *, n_head, d_k, d_v):
    """q/k/v: (B, L, d_model) float32. Returns (out, attn) like the PyTorch module."""
    B, Lq, Dm = q.shape
    Lk = k.shape[1]
    Lv = v.shape[1]
    assert Lk == Lv

    gamma, beta, wq, wk, wv, wfc, bfc = params

    # ---- wrapper-side input / weight prep (plain JAX glue) ----
    inv_temp = 1.0 / math.sqrt(d_k)
    wq_all = (wq.T * inv_temp).astype(jnp.bfloat16)            # (Dm, H*d_k), scale folded in
    wk_all = wk.T.astype(jnp.bfloat16)                         # (Dm, H*d_k)
    wv_all = wv.T.astype(jnp.bfloat16)                         # (Dm, H*d_v)
    wfc_all = wfc.T.astype(jnp.bfloat16)                       # (H*d_v, Dm)
    gamma2 = gamma.reshape(1, Dm).astype(jnp.float32)
    beta2 = beta.reshape(1, Dm).astype(jnp.float32)
    bfc2 = bfc.reshape(1, Dm).astype(jnp.float32)
    k_bf = k.astype(jnp.bfloat16)                              # halve k/v DMA bytes
    v_bf = v.astype(jnp.bfloat16)

    # ---- VMEM budget derived from actual block sizes (double-buffered I/O) ----
    vmem_need = (
        2 * (Lq * Dm * 4)                      # q block
        + 2 * (Lk * Dm * 2) + 2 * (Lv * Dm * 2)  # k, v blocks (bf16)
        + 2 * 2 * (Dm * n_head * d_k * 2)      # Wq, Wk (bf16, resident)
        + 2 * (Dm * n_head * d_v * 2)          # Wv
        + 2 * (n_head * d_v * Dm * 2)          # Wfc
        + 2 * (Lq * Dm * 4)                    # out block
        + 2 * (n_head * Lq * Lk * 4)           # attn block
        + Lq * n_head * d_v * 2                # o scratch
        + 6 * Dm * 4                           # gamma/beta/bias (+slack)
    )
    vmem_limit = int(min(110 * 1024 * 1024, max(32 * 1024 * 1024, 2 * vmem_need)))

    kernel = functools.partial(_mha_kernel, n_head=n_head, d_k=d_k, d_v=d_v)

    out, attn = pl.pallas_call(
        kernel,
        out_shape=(
            jax.ShapeDtypeStruct((B, Lq, Dm), jnp.float32),
            jax.ShapeDtypeStruct((B, n_head, Lq, Lk), jnp.float32),
        ),
        grid_spec=pltpu.PrefetchScalarGridSpec(
            num_scalar_prefetch=0,
            grid=(B,),
            in_specs=[
                pl.BlockSpec((1, Lq, Dm), lambda b: (b, 0, 0)),          # q (f32)
                pl.BlockSpec((1, Lk, Dm), lambda b: (b, 0, 0)),          # k (bf16)
                pl.BlockSpec((1, Lv, Dm), lambda b: (b, 0, 0)),          # v (bf16)
                pl.BlockSpec((Dm, n_head * d_k), lambda b: (0, 0)),      # Wq fused (resident)
                pl.BlockSpec((Dm, n_head * d_k), lambda b: (0, 0)),      # Wk fused
                pl.BlockSpec((Dm, n_head * d_v), lambda b: (0, 0)),      # Wv fused
                pl.BlockSpec((n_head * d_v, Dm), lambda b: (0, 0)),      # Wfc fused
                pl.BlockSpec((1, Dm), lambda b: (0, 0)),                 # fc bias
                pl.BlockSpec((1, Dm), lambda b: (0, 0)),                 # LN gamma
                pl.BlockSpec((1, Dm), lambda b: (0, 0)),                 # LN beta
            ],
            out_specs=[
                pl.BlockSpec((1, Lq, Dm), lambda b: (b, 0, 0)),              # out
                pl.BlockSpec((1, n_head, Lq, Lk), lambda b: (b, 0, 0, 0)),   # attn
            ],
            scratch_shapes=[pltpu.VMEM((Lq, n_head * d_v), jnp.bfloat16)],   # per-head outputs
        ),
        compiler_params=pltpu.CompilerParams(
            dimension_semantics=("parallel",),
            vmem_limit_bytes=vmem_limit,
        ),
    )(q, k_bf, v_bf, wq_all, wk_all, wv_all, wfc_all, bfc2, gamma2, beta2)
    return out, attn


# ---------------- pure-JAX reference (PyTorch module semantics, f32) ----------------
def ref_mha(q, k, v, params, *, n_head, d_k, d_v):
    gamma, beta, wq, wk, wv, wfc, bfc = params
    B, Lq, Dm = q.shape
    Lk = k.shape[1]
    residual = q
    mean = q.mean(-1, keepdims=True)
    var = ((q - mean) ** 2).mean(-1, keepdims=True)
    qn = (q - mean) / jnp.sqrt(var + 1e-6) * gamma + beta

    qp = (qn @ wq.T).reshape(B, Lq, n_head, d_k).transpose(0, 2, 1, 3)
    kp = (k @ wk.T).reshape(B, Lk, n_head, d_k).transpose(0, 2, 1, 3)
    vp = (v @ wv.T).reshape(B, Lk, n_head, d_v).transpose(0, 2, 1, 3)

    s = jnp.einsum('bhqd,bhkd->bhqk', qp / math.sqrt(d_k), kp)
    attn = jax.nn.softmax(s, axis=-1)
    o = jnp.einsum('bhqk,bhkd->bhqd', attn, vp)
    o = o.transpose(0, 2, 1, 3).reshape(B, Lq, n_head * d_v)
    out = o @ wfc.T + bfc + residual
    return out, attn


# ---------------- deterministic parameter init ----------------
def init_params(key, n_head, d_model, d_k, d_v):
    def xavier(key, out_f, in_f):
        bound = math.sqrt(6.0 / (in_f + out_f))
        return jax.random.uniform(key, (out_f, in_f), jnp.float32, -bound, bound)

    k1, k2, k3, k4, k5 = jax.random.split(key, 5)
    gamma = jnp.ones((d_model,), jnp.float32)
    beta = jnp.zeros((d_model,), jnp.float32)
    wq = xavier(k1, n_head * d_k, d_model)
    wk = xavier(k2, n_head * d_k, d_model)
    wv = xavier(k3, n_head * d_v, d_model)
    wfc = xavier(k4, d_model, n_head * d_v)
    b_bound = 1.0 / math.sqrt(n_head * d_v)
    bfc = jax.random.uniform(k5, (d_model,), jnp.float32, -b_bound, b_bound)
    return (gamma, beta, wq, wk, wv, wfc, bfc)


if __name__ == "__main__":
    B, L, d_model = 2, 8, 32
    n_head, d_k, d_v = 4, 8, 8

    key = jax.random.PRNGKey(0)
    kq, kk, kv, kp = jax.random.split(key, 4)
    q = jax.random.normal(kq, (B, L, d_model), jnp.float32)
    k = jax.random.normal(kk, (B, L, d_model), jnp.float32)
    v = jax.random.normal(kv, (B, L, d_model), jnp.float32)
    params = init_params(kp, n_head, d_model, d_k, d_v)

    out, attn = multi_head_attention(q, k, v, params,
                                     n_head=n_head, d_k=d_k, d_v=d_v)
    jax.block_until_ready((out, attn))

    out_ref, attn_ref = ref_mha(q, k, v, params,
                                n_head=n_head, d_k=d_k, d_v=d_v)
    # Tolerances account for bf16 MXU operands (f32 accumulation) vs. the f32 reference.
    assert jnp.allclose(out, out_ref, atol=5e-2, rtol=5e-2), "output mismatch"
    assert jnp.allclose(attn, attn_ref, atol=2e-2, rtol=2e-2), "attn mismatch"

    print("KERNEL_OK")
</pallas_src>

<mosaic_0001>
module attributes {stable_mosaic.version = 11 : i64} {
  func.func @_mha_kernel(%arg0: i32, %arg1: memref<1x8x32xf32, #tpu.memory_space<vmem>>, %arg2: memref<1x8x32xbf16, #tpu.memory_space<vmem>>, %arg3: memref<1x8x32xbf16, #tpu.memory_space<vmem>>, %arg4: memref<32x32xbf16, #tpu.memory_space<vmem>>, %arg5: memref<32x32xbf16, #tpu.memory_space<vmem>>, %arg6: memref<32x32xbf16, #tpu.memory_space<vmem>>, %arg7: memref<32x32xbf16, #tpu.memory_space<vmem>>, %arg8: memref<1x32xf32, #tpu.memory_space<vmem>>, %arg9: memref<1x32xf32, #tpu.memory_space<vmem>>, %arg10: memref<1x32xf32, #tpu.memory_space<vmem>>, %arg11: memref<1x8x32xf32, #tpu.memory_space<vmem>>, %arg12: memref<1x4x8x8xf32, #tpu.memory_space<vmem>>, %arg13: memref<8x32xbf16, #tpu.memory_space<vmem>>) attributes {dimension_semantics = [#tpu.dimension_semantics<parallel>], iteration_bounds = array<i64: 2>, scalar_prefetch = 0 : i64, scratch_operands = 1 : i64, tpu.core_type = #tpu.core_type<tc>, window_params = [{transform_indices = @transform_0, window_bounds = array<i64: 1, 8, 32>}, {transform_indices = @transform_1, window_bounds = array<i64: 1, 8, 32>}, {transform_indices = @transform_2, window_bounds = array<i64: 1, 8, 32>}, {pipeline_mode = #tpu.pipeline_mode<synchronous>, transform_indices = @transform_3, window_bounds = array<i64: 32, 32>}, {pipeline_mode = #tpu.pipeline_mode<synchronous>, transform_indices = @transform_4, window_bounds = array<i64: 32, 32>}, {pipeline_mode = #tpu.pipeline_mode<synchronous>, transform_indices = @transform_5, window_bounds = array<i64: 32, 32>}, {pipeline_mode = #tpu.pipeline_mode<synchronous>, transform_indices = @transform_6, window_bounds = array<i64: 32, 32>}, {pipeline_mode = #tpu.pipeline_mode<synchronous>, transform_indices = @transform_7, window_bounds = array<i64: 1, 32>}, {pipeline_mode = #tpu.pipeline_mode<synchronous>, transform_indices = @transform_8, window_bounds = array<i64: 1, 32>}, {pipeline_mode = #tpu.pipeline_mode<synchronous>, transform_indices = @transform_9, window_bounds = array<i64: 1, 32>}, {transform_indices = @transform_10, window_bounds = array<i64: 1, 8, 32>}, {transform_indices = @transform_11, window_bounds = array<i64: 1, 4, 8, 8>}]} {
    %c0 = arith.constant 0 : index
    %c0_0 = arith.constant 0 : index
    %c0_1 = arith.constant 0 : index
    %0 = vector.load %arg1[%c0, %c0_0, %c0_1] : memref<1x8x32xf32, #tpu.memory_space<vmem>>, vector<1x8x32xf32>
    %1 = vector.shape_cast %0 : vector<1x8x32xf32> to vector<8x32xf32>
    %cst = arith.constant dense<0.000000e+00> : vector<8xf32>
    %2 = vector.multi_reduction <add>, %1, %cst [1] : vector<8x32xf32> to vector<8xf32>
    %3 = vector.shape_cast %2 : vector<8xf32> to vector<8x1xf32>
    %cst_2 = arith.constant 3.200000e+01 : f32
    %4 = vector.broadcast %cst_2 : f32 to vector<8x1xf32>
    %5 = arith.divf %3, %4 : vector<8x1xf32>
    %6 = vector.broadcast %5 : vector<8x1xf32> to vector<8x32xf32>
    %7 = arith.subf %1, %6 : vector<8x32xf32>
    %8 = arith.mulf %7, %7 : vector<8x32xf32>
    %cst_3 = arith.constant dense<0.000000e+00> : vector<8xf32>
    %9 = vector.multi_reduction <add>, %8, %cst_3 [1] : vector<8x32xf32> to vector<8xf32>
    %10 = vector.shape_cast %9 : vector<8xf32> to vector<8x1xf32>
    %cst_4 = arith.constant 3.200000e+01 : f32
    %11 = vector.broadcast %cst_4 : f32 to vector<8x1xf32>
    %12 = arith.divf %10, %11 : vector<8x1xf32>
    %13 = vector.broadcast %5 : vector<8x1xf32> to vector<8x32xf32>
    %14 = arith.subf %1, %13 : vector<8x32xf32>
    %cst_5 = arith.constant 9.99999997E-7 : f32
    %15 = vector.broadcast %cst_5 : f32 to vector<8x1xf32>
    %16 = arith.addf %12, %15 : vector<8x1xf32>
    %17 = math.rsqrt %16 : vector<8x1xf32>
    %18 = vector.broadcast %17 : vector<8x1xf32> to vector<8x32xf32>
    %19 = arith.mulf %14, %18 : vector<8x32xf32>
    %c0_6 = arith.constant 0 : index
    %c0_7 = arith.constant 0 : index
    %20 = vector.load %arg9[%c0_6, %c0_7] : memref<1x32xf32, #tpu.memory_space<vmem>>, vector<1x32xf32>
    %21 = vector.broadcast %20 : vector<1x32xf32> to vector<8x32xf32>
    %22 = arith.mulf %19, %21 : vector<8x32xf32>
    %c0_8 = arith.constant 0 : index
    %c0_9 = arith.constant 0 : index
    %23 = vector.load %arg10[%c0_8, %c0_9] : memref<1x32xf32, #tpu.memory_space<vmem>>, vector<1x32xf32>
    %24 = vector.broadcast %23 : vector<1x32xf32> to vector<8x32xf32>
    %25 = arith.addf %22, %24 : vector<8x32xf32>
    %26 = arith.truncf %25 : vector<8x32xf32> to vector<8x32xbf16>
    %c0_10 = arith.constant 0 : index
    %c0_11 = arith.constant 0 : index
    %c0_12 = arith.constant 0 : index
    %27 = vector.load %arg2[%c0_10, %c0_11, %c0_12] : memref<1x8x32xbf16, #tpu.memory_space<vmem>>, vector<1x8x32xbf16>
    %28 = vector.shape_cast %27 : vector<1x8x32xbf16> to vector<8x32xbf16>
    %c0_13 = arith.constant 0 : index
    %c0_14 = arith.constant 0 : index
    %c0_15 = arith.constant 0 : index
    %29 = vector.load %arg3[%c0_13, %c0_14, %c0_15] : memref<1x8x32xbf16, #tpu.memory_space<vmem>>, vector<1x8x32xbf16>
    %30 = vector.shape_cast %29 : vector<1x8x32xbf16> to vector<8x32xbf16>
    %c0_16 = arith.constant 0 : index
    %c0_17 = arith.constant 0 : index
    %31 = vector.load %arg4[%c0_16, %c0_17] : memref<32x32xbf16, #tpu.memory_space<vmem>>, vector<32x32xbf16>
    %cst_18 = arith.constant dense<0.000000e+00> : vector<8x32xf32>
    %32 = tpu.matmul %26, %31, %cst_18 {dimension_numbers = #tpu.dot_dimension_numbers<[1], [0], [0], [1], [0, 0, 1, 1], [], []>} : vector<8x32xbf16>, vector<32x32xbf16>, vector<8x32xf32> -> vector<8x32xf32>
    %c0_19 = arith.constant 0 : index
    %c0_20 = arith.constant 0 : index
    %33 = vector.load %arg5[%c0_19, %c0_20] : memref<32x32xbf16, #tpu.memory_space<vmem>>, vector<32x32xbf16>
    %cst_21 = arith.constant dense<0.000000e+00> : vector<8x32xf32>
    %34 = tpu.matmul %28, %33, %cst_21 {dimension_numbers = #tpu.dot_dimension_numbers<[1], [0], [0], [1], [0, 0, 1, 1], [], []>} : vector<8x32xbf16>, vector<32x32xbf16>, vector<8x32xf32> -> vector<8x32xf32>
    %c0_22 = arith.constant 0 : index
    %c0_23 = arith.constant 0 : index
    %35 = vector.load %arg6[%c0_22, %c0_23] : memref<32x32xbf16, #tpu.memory_space<vmem>>, vector<32x32xbf16>
    %cst_24 = arith.constant dense<0.000000e+00> : vector<8x32xf32>
    %36 = tpu.matmul %30, %35, %cst_24 {dimension_numbers = #tpu.dot_dimension_numbers<[1], [0], [0], [1], [0, 0, 1, 1], [], []>} : vector<8x32xbf16>, vector<32x32xbf16>, vector<8x32xf32> -> vector<8x32xf32>
    %37 = arith.truncf %32 : vector<8x32xf32> to vector<8x32xbf16>
    %38 = arith.truncf %34 : vector<8x32xf32> to vector<8x32xbf16>
    %39 = arith.truncf %36 : vector<8x32xf32> to vector<8x32xbf16>
    %40 = vector.extract_strided_slice %37 {offsets = [0, 0], sizes = [8, 8], strides = [1, 1]} : vector<8x32xbf16> to vector<8x8xbf16>
    %41 = vector.extract_strided_slice %38 {offsets = [0, 0], sizes = [8, 8], strides = [1, 1]} : vector<8x32xbf16> to vector<8x8xbf16>
    %42 = vector.extract_strided_slice %39 {offsets = [0, 0], sizes = [8, 8], strides = [1, 1]} : vector<8x32xbf16> to vector<8x8xbf16>
    %cst_25 = arith.constant dense<0.000000e+00> : vector<8x8xf32>
    %43 = tpu.matmul %40, %41, %cst_25 {dimension_numbers = #tpu.dot_dimension_numbers<[1], [1], [0], [0], [0, 0, 1, 0], [], []>} : vector<8x8xbf16>, vector<8x8xbf16>, vector<8x8xf32> -> vector<8x8xf32>
    %cst_26 = arith.constant dense<0xFF800000> : vector<8xf32>
    %44 = vector.multi_reduction <maximumf>, %43, %cst_26 [1] : vector<8x8xf32> to vector<8xf32>
    %45 = vector.shape_cast %44 : vector<8xf32> to vector<8x1xf32>
    %46 = vector.broadcast %45 : vector<8x1xf32> to vector<8x8xf32>
    %47 = arith.subf %43, %46 : vector<8x8xf32>
    %48 = math.exp %47 : vector<8x8xf32>
    %cst_27 = arith.constant dense<0.000000e+00> : vector<8xf32>
    %49 = vector.multi_reduction <add>, %48, %cst_27 [1] : vector<8x8xf32> to vector<8xf32>
    %50 = vector.shape_cast %49 : vector<8xf32> to vector<8x1xf32>
    %cst_28 = arith.constant 1.000000e+00 : f32
    %51 = vector.broadcast %cst_28 : f32 to vector<8x1xf32>
    %52 = arith.divf %51, %50 : vector<8x1xf32>
    %53 = vector.broadcast %52 : vector<8x1xf32> to vector<8x8xf32>
    %54 = arith.mulf %48, %53 : vector<8x8xf32>
    %c0_29 = arith.constant 0 : index
    %c0_30 = arith.constant 0 : index
    %c0_31 = arith.constant 0 : index
    %c0_32 = arith.constant 0 : index
    %55 = vector.load %arg12[%c0_29, %c0_30, %c0_31, %c0_32] : memref<1x4x8x8xf32, #tpu.memory_space<vmem>>, vector<1x1x8x8xf32>
    %56 = vector.shape_cast %55 : vector<1x1x8x8xf32> to vector<8x8xf32>
    %57 = vector.shape_cast %54 : vector<8x8xf32> to vector<1x1x8x8xf32>
    tpu.vector_store %arg12[%c0_29, %c0_30, %c0_31, %c0_32], %57 {strides = array<i32>} : memref<1x4x8x8xf32, #tpu.memory_space<vmem>>, vector<1x1x8x8xf32>,
    %58 = arith.truncf %54 : vector<8x8xf32> to vector<8x8xbf16>
    %cst_33 = arith.constant dense<0.000000e+00> : vector<8x8xf32>
    %59 = tpu.matmul %58, %42, %cst_33 {dimension_numbers = #tpu.dot_dimension_numbers<[1], [0], [0], [1], [0, 0, 1, 1], [], []>} : vector<8x8xbf16>, vector<8x8xbf16>, vector<8x8xf32> -> vector<8x8xf32>
    %60 = arith.truncf %59 : vector<8x8xf32> to vector<8x8xbf16>
    %c0_34 = arith.constant 0 : index
    %c0_35 = arith.constant 0 : index
    %61 = vector.load %arg13[%c0_34, %c0_35] : memref<8x32xbf16, #tpu.memory_space<vmem>>, vector<8x8xbf16>
    tpu.vector_store %arg13[%c0_34, %c0_35], %60 {strides = array<i32>} : memref<8x32xbf16, #tpu.memory_space<vmem>>, vector<8x8xbf16>,
    %62 = vector.extract_strided_slice %37 {offsets = [0, 8], sizes = [8, 8], strides = [1, 1]} : vector<8x32xbf16> to vector<8x8xbf16>
    %63 = vector.extract_strided_slice %38 {offsets = [0, 8], sizes = [8, 8], strides = [1, 1]} : vector<8x32xbf16> to vector<8x8xbf16>
    %64 = vector.extract_strided_slice %39 {offsets = [0, 8], sizes = [8, 8], strides = [1, 1]} : vector<8x32xbf16> to vector<8x8xbf16>
    %cst_36 = arith.constant dense<0.000000e+00> : vector<8x8xf32>
    %65 = tpu.matmul %62, %63, %cst_36 {dimension_numbers = #tpu.dot_dimension_numbers<[1], [1], [0], [0], [0, 0, 1, 0], [], []>} : vector<8x8xbf16>, vector<8x8xbf16>, vector<8x8xf32> -> vector<8x8xf32>
    %cst_37 = arith.constant dense<0xFF800000> : vector<8xf32>
    %66 = vector.multi_reduction <maximumf>, %65, %cst_37 [1] : vector<8x8xf32> to vector<8xf32>
    %67 = vector.shape_cast %66 : vector<8xf32> to vector<8x1xf32>
    %68 = vector.broadcast %67 : vector<8x1xf32> to vector<8x8xf32>
    %69 = arith.subf %65, %68 : vector<8x8xf32>
    %70 = math.exp %69 : vector<8x8xf32>
    %cst_38 = arith.constant dense<0.000000e+00> : vector<8xf32>
    %71 = vector.multi_reduction <add>, %70, %cst_38 [1] : vector<8x8xf32> to vector<8xf32>
    %72 = vector.shape_cast %71 : vector<8xf32> to vector<8x1xf32>
    %cst_39 = arith.constant 1.000000e+00 : f32
    %73 = vector.broadcast %cst_39 : f32 to vector<8x1xf32>
    %74 = arith.divf %73, %72 : vector<8x1xf32>
    %75 = vector.broadcast %74 : vector<8x1xf32> to vector<8x8xf32>
    %76 = arith.mulf %70, %75 : vector<8x8xf32>
    %c0_40 = arith.constant 0 : index
    %c1 = arith.constant 1 : index
    %c0_41 = arith.constant 0 : index
    %c0_42 = arith.constant 0 : index
    %77 = vector.load %arg12[%c0_40, %c1, %c0_41, %c0_42] : memref<1x4x8x8xf32, #tpu.memory_space<vmem>>, vector<1x1x8x8xf32>
    %78 = vector.shape_cast %77 : vector<1x1x8x8xf32> to vector<8x8xf32>
    %79 = vector.shape_cast %76 : vector<8x8xf32> to vector<1x1x8x8xf32>
    tpu.vector_store %arg12[%c0_40, %c1, %c0_41, %c0_42], %79 {strides = array<i32>} : memref<1x4x8x8xf32, #tpu.memory_space<vmem>>, vector<1x1x8x8xf32>,
    %80 = arith.truncf %76 : vector<8x8xf32> to vector<8x8xbf16>
    %cst_43 = arith.constant dense<0.000000e+00> : vector<8x8xf32>
    %81 = tpu.matmul %80, %64, %cst_43 {dimension_numbers = #tpu.dot_dimension_numbers<[1], [0], [0], [1], [0, 0, 1, 1], [], []>} : vector<8x8xbf16>, vector<8x8xbf16>, vector<8x8xf32> -> vector<8x8xf32>
    %82 = arith.truncf %81 : vector<8x8xf32> to vector<8x8xbf16>
    %c0_44 = arith.constant 0 : index
    %c8 = arith.constant 8 : index
    %83 = vector.load %arg13[%c0_44, %c8] : memref<8x32xbf16, #tpu.memory_space<vmem>>, vector<8x8xbf16>
    tpu.vector_store %arg13[%c0_44, %c8], %82 {strides = array<i32>} : memref<8x32xbf16, #tpu.memory_space<vmem>>, vector<8x8xbf16>,
    %84 = vector.extract_strided_slice %37 {offsets = [0, 16], sizes = [8, 8], strides = [1, 1]} : vector<8x32xbf16> to vector<8x8xbf16>
    %85 = vector.extract_strided_slice %38 {offsets = [0, 16], sizes = [8, 8], strides = [1, 1]} : vector<8x32xbf16> to vector<8x8xbf16>
    %86 = vector.extract_strided_slice %39 {offsets = [0, 16], sizes = [8, 8], strides = [1, 1]} : vector<8x32xbf16> to vector<8x8xbf16>
    %cst_45 = arith.constant dense<0.000000e+00> : vector<8x8xf32>
    %87 = tpu.matmul %84, %85, %cst_45 {dimension_numbers = #tpu.dot_dimension_numbers<[1], [1], [0], [0], [0, 0, 1, 0], [], []>} : vector<8x8xbf16>, vector<8x8xbf16>, vector<8x8xf32> -> vector<8x8xf32>
    %cst_46 = arith.constant dense<0xFF800000> : vector<8xf32>
    %88 = vector.multi_reduction <maximumf>, %87, %cst_46 [1] : vector<8x8xf32> to vector<8xf32>
    %89 = vector.shape_cast %88 : vector<8xf32> to vector<8x1xf32>
    %90 = vector.broadcast %89 : vector<8x1xf32> to vector<8x8xf32>
    %91 = arith.subf %87, %90 : vector<8x8xf32>
    %92 = math.exp %91 : vector<8x8xf32>
    %cst_47 = arith.constant dense<0.000000e+00> : vector<8xf32>
    %93 = vector.multi_reduction <add>, %92, %cst_47 [1] : vector<8x8xf32> to vector<8xf32>
    %94 = vector.shape_cast %93 : vector<8xf32> to vector<8x1xf32>
    %cst_48 = arith.constant 1.000000e+00 : f32
    %95 = vector.broadcast %cst_48 : f32 to vector<8x1xf32>
    %96 = arith.divf %95, %94 : vector<8x1xf32>
    %97 = vector.broadcast %96 : vector<8x1xf32> to vector<8x8xf32>
    %98 = arith.mulf %92, %97 : vector<8x8xf32>
    %c0_49 = arith.constant 0 : index
    %c2 = arith.constant 2 : index
    %c0_50 = arith.constant 0 : index
    %c0_51 = arith.constant 0 : index
    %99 = vector.load %arg12[%c0_49, %c2, %c0_50, %c0_51] : memref<1x4x8x8xf32, #tpu.memory_space<vmem>>, vector<1x1x8x8xf32>
    %100 = vector.shape_cast %99 : vector<1x1x8x8xf32> to vector<8x8xf32>
    %101 = vector.shape_cast %98 : vector<8x8xf32> to vector<1x1x8x8xf32>
    tpu.vector_store %arg12[%c0_49, %c2, %c0_50, %c0_51], %101 {strides = array<i32>} : memref<1x4x8x8xf32, #tpu.memory_space<vmem>>, vector<1x1x8x8xf32>,
    %102 = arith.truncf %98 : vector<8x8xf32> to vector<8x8xbf16>
    %cst_52 = arith.constant dense<0.000000e+00> : vector<8x8xf32>
    %103 = tpu.matmul %102, %86, %cst_52 {dimension_numbers = #tpu.dot_dimension_numbers<[1], [0], [0], [1], [0, 0, 1, 1], [], []>} : vector<8x8xbf16>, vector<8x8xbf16>, vector<8x8xf32> -> vector<8x8xf32>
    %104 = arith.truncf %103 : vector<8x8xf32> to vector<8x8xbf16>
    %c0_53 = arith.constant 0 : index
    %c16 = arith.constant 16 : index
    %105 = vector.load %arg13[%c0_53, %c16] : memref<8x32xbf16, #tpu.memory_space<vmem>>, vector<8x8xbf16>
    tpu.vector_store %arg13[%c0_53, %c16], %104 {strides = array<i32>} : memref<8x32xbf16, #tpu.memory_space<vmem>>, vector<8x8xbf16>,
    %106 = vector.extract_strided_slice %37 {offsets = [0, 24], sizes = [8, 8], strides = [1, 1]} : vector<8x32xbf16> to vector<8x8xbf16>
    %107 = vector.extract_strided_slice %38 {offsets = [0, 24], sizes = [8, 8], strides = [1, 1]} : vector<8x32xbf16> to vector<8x8xbf16>
    %108 = vector.extract_strided_slice %39 {offsets = [0, 24], sizes = [8, 8], strides = [1, 1]} : vector<8x32xbf16> to vector<8x8xbf16>
    %cst_54 = arith.constant dense<0.000000e+00> : vector<8x8xf32>
    %109 = tpu.matmul %106, %107, %cst_54 {dimension_numbers = #tpu.dot_dimension_numbers<[1], [1], [0], [0], [0, 0, 1, 0], [], []>} : vector<8x8xbf16>, vector<8x8xbf16>, vector<8x8xf32> -> vector<8x8xf32>
    %cst_55 = arith.constant dense<0xFF800000> : vector<8xf32>
    %110 = vector.multi_reduction <maximumf>, %109, %cst_55 [1] : vector<8x8xf32> to vector<8xf32>
    %111 = vector.shape_cast %110 : vector<8xf32> to vector<8x1xf32>
    %112 = vector.broadcast %111 : vector<8x1xf32> to vector<8x8xf32>
    %113 = arith.subf %109, %112 : vector<8x8xf32>
    %114 = math.exp %113 : vector<8x8xf32>
    %cst_56 = arith.constant dense<0.000000e+00> : vector<8xf32>
    %115 = vector.multi_reduction <add>, %114, %cst_56 [1] : vector<8x8xf32> to vector<8xf32>
    %116 = vector.shape_cast %115 : vector<8xf32> to vector<8x1xf32>
    %cst_57 = arith.constant 1.000000e+00 : f32
    %117 = vector.broadcast %cst_57 : f32 to vector<8x1xf32>
    %118 = arith.divf %117, %116 : vector<8x1xf32>
    %119 = vector.broadcast %118 : vector<8x1xf32> to vector<8x8xf32>
    %120 = arith.mulf %114, %119 : vector<8x8xf32>
    %c0_58 = arith.constant 0 : index
    %c3 = arith.constant 3 : index
    %c0_59 = arith.constant 0 : index
    %c0_60 = arith.constant 0 : index
    %121 = vector.load %arg12[%c0_58, %c3, %c0_59, %c0_60] : memref<1x4x8x8xf32, #tpu.memory_space<vmem>>, vector<1x1x8x8xf32>
    %122 = vector.shape_cast %121 : vector<1x1x8x8xf32> to vector<8x8xf32>
    %123 = vector.shape_cast %120 : vector<8x8xf32> to vector<1x1x8x8xf32>
    tpu.vector_store %arg12[%c0_58, %c3, %c0_59, %c0_60], %123 {strides = array<i32>} : memref<1x4x8x8xf32, #tpu.memory_space<vmem>>, vector<1x1x8x8xf32>,
    %124 = arith.truncf %120 : vector<8x8xf32> to vector<8x8xbf16>
    %cst_61 = arith.constant dense<0.000000e+00> : vector<8x8xf32>
    %125 = tpu.matmul %124, %108, %cst_61 {dimension_numbers = #tpu.dot_dimension_numbers<[1], [0], [0], [1], [0, 0, 1, 1], [], []>} : vector<8x8xbf16>, vector<8x8xbf16>, vector<8x8xf32> -> vector<8x8xf32>
    %126 = arith.truncf %125 : vector<8x8xf32> to vector<8x8xbf16>
    %c0_62 = arith.constant 0 : index
    %c24 = arith.constant 24 : index
    %127 = vector.load %arg13[%c0_62, %c24] : memref<8x32xbf16, #tpu.memory_space<vmem>>, vector<8x8xbf16>
    tpu.vector_store %arg13[%c0_62, %c24], %126 {strides = array<i32>} : memref<8x32xbf16, #tpu.memory_space<vmem>>, vector<8x8xbf16>,
    %c0_63 = arith.constant 0 : index
    %c0_64 = arith.constant 0 : index
    %128 = vector.load %arg13[%c0_63, %c0_64] : memref<8x32xbf16, #tpu.memory_space<vmem>>, vector<8x32xbf16>
    %c0_65 = arith.constant 0 : index
    %c0_66 = arith.constant 0 : index
    %129 = vector.load %arg7[%c0_65, %c0_66] : memref<32x32xbf16, #tpu.memory_space<vmem>>, vector<32x32xbf16>
    %cst_67 = arith.constant dense<0.000000e+00> : vector<8x32xf32>
    %130 = tpu.matmul %128, %129, %cst_67 {dimension_numbers = #tpu.dot_dimension_numbers<[1], [0], [0], [1], [0, 0, 1, 1], [], []>} : vector<8x32xbf16>, vector<32x32xbf16>, vector<8x32xf32> -> vector<8x32xf32>
    %c0_68 = arith.constant 0 : index
    %c0_69 = arith.constant 0 : index
    %131 = vector.load %arg8[%c0_68, %c0_69] : memref<1x32xf32, #tpu.memory_space<vmem>>, vector<1x32xf32>
    %132 = vector.broadcast %131 : vector<1x32xf32> to vector<8x32xf32>
    %133 = arith.addf %130, %132 : vector<8x32xf32>
    %c0_70 = arith.constant 0 : index
    %c0_71 = arith.constant 0 : index
    %c0_72 = arith.constant 0 : index
    %134 = vector.load %arg1[%c0_70, %c0_71, %c0_72] : memref<1x8x32xf32, #tpu.memory_space<vmem>>, vector<1x8x32xf32>
    %135 = vector.shape_cast %134 : vector<1x8x32xf32> to vector<8x32xf32>
    %136 = arith.addf %133, %135 : vector<8x32xf32>
    %c0_73 = arith.constant 0 : index
    %c0_74 = arith.constant 0 : index
    %c0_75 = arith.constant 0 : index
    %137 = vector.load %arg11[%c0_73, %c0_74, %c0_75] : memref<1x8x32xf32, #tpu.memory_space<vmem>>, vector<1x8x32xf32>
    %138 = vector.shape_cast %137 : vector<1x8x32xf32> to vector<8x32xf32>
    %139 = vector.shape_cast %136 : vector<8x32xf32> to vector<1x8x32xf32>
    tpu.vector_store %arg11[%c0_73, %c0_74, %c0_75], %139 {strides = array<i32>} : memref<1x8x32xf32, #tpu.memory_space<vmem>>, vector<1x8x32xf32>,
    return
  }
  func.func @transform_0(%arg0: i32) -> (i32, i32, i32) {
    %c0_i32 = arith.constant 0 : i32
    %c0_i32_0 = arith.constant 0 : i32
    %c0_i32_1 = arith.constant 0 : i32
    return %arg0, %c0_i32, %c0_i32_0 : i32, i32, i32
  }
  func.func @transform_1(%arg0: i32) -> (i32, i32, i32) {
    %c0_i32 = arith.constant 0 : i32
    %c0_i32_0 = arith.constant 0 : i32
    %c0_i32_1 = arith.constant 0 : i32
    return %arg0, %c0_i32, %c0_i32_0 : i32, i32, i32
  }
  func.func @transform_2(%arg0: i32) -> (i32, i32, i32) {
    %c0_i32 = arith.constant 0 : i32
    %c0_i32_0 = arith.constant 0 : i32
    %c0_i32_1 = arith.constant 0 : i32
    return %arg0, %c0_i32, %c0_i32_0 : i32, i32, i32
  }
  func.func @transform_3(%arg0: i32) -> (i32, i32) {
    %c0_i32 = arith.constant 0 : i32
    %c0_i32_0 = arith.constant 0 : i32
    %c0_i32_1 = arith.constant 0 : i32
    return %c0_i32, %c0_i32_0 : i32, i32
  }
  func.func @transform_4(%arg0: i32) -> (i32, i32) {
    %c0_i32 = arith.constant 0 : i32
    %c0_i32_0 = arith.constant 0 : i32
    %c0_i32_1 = arith.constant 0 : i32
    return %c0_i32, %c0_i32_0 : i32, i32
  }
  func.func @transform_5(%arg0: i32) -> (i32, i32) {
    %c0_i32 = arith.constant 0 : i32
    %c0_i32_0 = arith.constant 0 : i32
    %c0_i32_1 = arith.constant 0 : i32
    return %c0_i32, %c0_i32_0 : i32, i32
  }
  func.func @transform_6(%arg0: i32) -> (i32, i32) {
    %c0_i32 = arith.constant 0 : i32
    %c0_i32_0 = arith.constant 0 : i32
    %c0_i32_1 = arith.constant 0 : i32
    return %c0_i32, %c0_i32_0 : i32, i32
  }
  func.func @transform_7(%arg0: i32) -> (i32, i32) {
    %c0_i32 = arith.constant 0 : i32
    %c0_i32_0 = arith.constant 0 : i32
    %c0_i32_1 = arith.constant 0 : i32
    return %c0_i32, %c0_i32_0 : i32, i32
  }
  func.func @transform_8(%arg0: i32) -> (i32, i32) {
    %c0_i32 = arith.constant 0 : i32
    %c0_i32_0 = arith.constant 0 : i32
    %c0_i32_1 = arith.constant 0 : i32
    return %c0_i32, %c0_i32_0 : i32, i32
  }
  func.func @transform_9(%arg0: i32) -> (i32, i32) {
    %c0_i32 = arith.constant 0 : i32
    %c0_i32_0 = arith.constant 0 : i32
    %c0_i32_1 = arith.constant 0 : i32
    return %c0_i32, %c0_i32_0 : i32, i32
  }
  func.func @transform_10(%arg0: i32) -> (i32, i32, i32) {
    %c0_i32 = arith.constant 0 : i32
    %c0_i32_0 = arith.constant 0 : i32
    %c0_i32_1 = arith.constant 0 : i32
    return %arg0, %c0_i32, %c0_i32_0 : i32, i32, i32
  }
  func.func @transform_11(%arg0: i32) -> (i32, i32, i32, i32) {
    %c0_i32 = arith.constant 0 : i32
    %c0_i32_0 = arith.constant 0 : i32
    %c0_i32_1 = arith.constant 0 : i32
    %c0_i32_2 = arith.constant 0 : i32
    return %arg0, %c0_i32, %c0_i32_0, %c0_i32_1 : i32, i32, i32, i32
  }
}

</mosaic_0001>

<llo_original>
// kernel: tpu_custom_call.1
$region0: #{tpu_custom_call.1}
  #allocation0 [shape = 'u32[]', space=smem, size = 0x4, offset = 0x4, fixed_abs, tag = 'smem constant byte address 0x4 - core index']
  #allocation1 [shape = 'u32[72,128]{1,0:T(1,128)}', space=vmem, size = 0x9000, scoped, tag = 'internal scratch']
  #allocation2 [shape = 'bf16[8,32]{1,0:T(8,128)(2,1)}', space=vmem, size = 0x800, scoped, tag = 'scratch operand']
  %s0 = inlined_call_operand.hbm [shape: f32[2,8,32], index: 0, kind: input, shape index: {}]
  %s1 = inlined_call_operand.hbm [shape: bf16[2,8,32], index: 1, kind: input, shape index: {}]
  %s2 = inlined_call_operand.hbm [shape: bf16[2,8,32], index: 2, kind: input, shape index: {}]
  %s3 = inlined_call_operand.hbm [shape: bf16[32,32], index: 3, kind: input, shape index: {}]
  %s4 = inlined_call_operand.hbm [shape: bf16[32,32], index: 4, kind: input, shape index: {}]
  %s5 = inlined_call_operand.hbm [shape: bf16[32,32], index: 5, kind: input, shape index: {}]
  %s6 = inlined_call_operand.hbm [shape: bf16[32,32], index: 6, kind: input, shape index: {}]
  %s7 = inlined_call_operand.vmem [shape: f32[1,32], index: 7, kind: input, shape index: {}]
  %s8 = inlined_call_operand.vmem [shape: f32[1,32], index: 8, kind: input, shape index: {}]
  %s9 = inlined_call_operand.vmem [shape: f32[1,32], index: 9, kind: input, shape index: {}]
  %s10 = inlined_call_operand.hbm [shape: f32[2,8,32], index: 10, kind: output, shape index: {0}]
  %s11 = inlined_call_operand.hbm [shape: f32[2,4,8,8], index: 11, kind: output, shape index: {1}]
  %12 = xla_tuple %s10, %s11
  %s13 = sld [smem:[#allocation0]]
  $region109: #{tpu_custom_call.1} parent=0
    _
  %s15 = ssub.s32 1, %s13
  %s16 = scalar_select 0, %s15, %s13
  $region1: #{tpu_custom_call.1} parent=0
    #allocation3 [shape = 'u8[8192]{0}', space=vmem, size = 0x2000, scoped, tag = 'input window, operand 0']
    #allocation4 [shape = 's32[2]{0}', space=sflag, size = 0x8, scoped, tag = 'scoped memory for tpu_custom_call.1']
    #allocation5 [shape = 's32[2]{0}', space=sflag, size = 0x8, scoped, tag = 'scoped memory for tpu_custom_call.1']
    #allocation6 [shape = 'u8[4096]{0}', space=vmem, size = 0x1000, scoped, tag = 'input window, operand 1']
    #allocation7 [shape = 's32[2]{0}', space=sflag, size = 0x8, scoped, tag = 'scoped memory for tpu_custom_call.1']
    #allocation8 [shape = 'u8[4096]{0}', space=vmem, size = 0x1000, scoped, tag = 'input window, operand 2']
    #allocation9 [shape = 'u8[8192]{0}', space=vmem, size = 0x2000, scoped, tag = 'input window, operand 3, single buffered']
    #allocation10 [shape = 's32[1]{0}', space=sflag, size = 0x4, scoped, tag = 'scoped memory for tpu_custom_call.1']
    #allocation11 [shape = 'u8[8192]{0}', space=vmem, size = 0x2000, scoped, tag = 'input window, operand 4, single buffered']
    #allocation12 [shape = 'u8[8192]{0}', space=vmem, size = 0x2000, scoped, tag = 'input window, operand 5, single buffered']
    #allocation13 [shape = 's32[1]{0}', space=sflag, size = 0x4, scoped, tag = 'scoped memory for tpu_custom_call.1']
    #allocation14 [shape = 'u8[8192]{0}', space=vmem, size = 0x2000, scoped, tag = 'input window, operand 6, single buffered']
    #allocation15 [shape = 'u8[8192]{0}', space=vmem, size = 0x2000, scoped, tag = 'output window, operand 0']
    #allocation16 [shape = 'u8[32768]{0}', space=vmem, size = 0x8000, scoped, tag = 'output window, operand 1']
    #allocation17 [shape = 's32[2]{0}', space=sflag, size = 0x8, scoped, tag = 'scoped memory for tpu_custom_call.1']
    %17 = vsyncpa [#allocation4], 0
    %s18 = scalar_lea.sflag [#allocation4], 1
    %19 = vsyncpa %s18, 0
    %20 = vsyncpa [#allocation7], 0
    %s21 = scalar_lea.sflag [#allocation7], 1
    %22 = vsyncpa %s21, 0
    %23 = vsyncpa [#allocation10], 0
    %24 = vsyncpa [#allocation13], 0
    %25 = vsyncpa [#allocation5], 0
    %s26 = scalar_lea.sflag [#allocation5], 1
    %27 = vsyncpa %s26, 0
    %28 = vsyncpa [#allocation17], 0
    %s29 = scalar_lea.sflag [#allocation17], 1
    %30 = vsyncpa %s29, 0
    loop: start=0, step=1, limit=4
    $region2: #{tpu_custom_call.1} parent=1 // loop_pre_header
      _
    $region3: #{tpu_custom_call.1} parent=1 // loop_header
      %s32 = sphi 0, %s36
      %p33 = scmp.ge.s32.totalorder %s32, 4
      %s42 = sphi 0, %s44
      %s45 = sphi 0, %s42
      %s46 = sphi 0, %s45
      %s62 = sphi 0, %s46
      %s68 = sphi 0, %s70
      %s71 = sphi 0, %s68
      %s72 = sphi 0, %s71
      %s88 = sphi 0, %s72
      %s94 = sphi 0, %s96
      %s97 = sphi 0, %s94
      %s98 = sphi 0, %s97
      %s114 = sphi 0, %s98
      %s118 = sphi 0, %s118
      %s120 = sphi 0, %s118
      %s121 = sphi 0, %s120
      %s135 = sphi 0, %s121
      %s139 = sphi 0, %s139
      %s141 = sphi 0, %s139
      %s142 = sphi 0, %s141
      %s156 = sphi 0, %s142
      %s160 = sphi 0, %s160
      %s162 = sphi 0, %s160
      %s163 = sphi 0, %s162
      %s177 = sphi 0, %s163
      %s181 = sphi 0, %s181
      %s183 = sphi 0, %s181
      %s184 = sphi 0, %s183
      %s198 = sphi 0, %s184
      %s202 = sphi 0, %s202
      %s204 = sphi 0, %s202
      %s205 = sphi 0, %s204
      %s219 = sphi 0, %s205
      %s223 = sphi 0, %s223
      %s225 = sphi 0, %s223
      %s226 = sphi 0, %s225
      %s240 = sphi 0, %s226
      %s244 = sphi 0, %s244
      %s246 = sphi 0, %s244
      %s247 = sphi 0, %s246
      %s261 = sphi 0, %s247
      %s267 = sphi 0, %s269
      %s270 = sphi 0, %s267
      %s271 = sphi 0, %s270
      %s287 = sphi 0, %s271
      %s293 = sphi 0, %s295
      %s296 = sphi 0, %s293
      %s297 = sphi 0, %s296
      %s313 = sphi 0, %s297
    $region4: #{tpu_custom_call.1} parent=1 // loop_header_branch
      %35 = sbr.rel (%p33) target = $region8
    $region5: #{tpu_custom_call.1} parent=1 // loop_body
      %s37 = ssub.s32 %s32, 1
      %s38 = ssub.s32 %s32, 2
      %s39 = sadd.s32 %s32, 1
      %s40 = ssub.s32 %s32, %s39
      %p41 = scmp.eq.s32.totalorder %s40, 0
      %s43 = sadd.s32 %s42, 1
      %s44 = scalar_select %p41, %s42, %s43
      %p47 = pneg %p41
      %p48 = scmp.eq.s32.totalorder %s32, 1
      %p49 = por %p47, %p48
      %p50 = scmp.ne.s32.totalorder %s42, %s45
      %p51 = scmp.eq.s32.totalorder %s32, 0
      %p52 = por %p50, %p51
      %p53 = scmp.ne.s32.totalorder %s42, %s45
      %p54 = scmp.eq.s32.totalorder %s37, 1
      %p55 = por %p53, %p54
      %p56 = scmp.ne.s32.totalorder %s45, %s46
      %p57 = scmp.eq.s32.totalorder %s37, 0
      %p58 = por %p56, %p57
      %p59 = scmp.ne.s32.totalorder %s45, %s46
      %p60 = scmp.eq.s32.totalorder %s38, 1
      %p61 = por %p59, %p60
      %p63 = scmp.ne.s32.totalorder %s46, %s62
      %p64 = scmp.eq.s32.totalorder %s38, 0
      %p65 = por %p63, %p64
      %s66 = ssub.s32 %s32, %s39
      %p67 = scmp.eq.s32.totalorder %s66, 0
      %s69 = sadd.s32 %s68, 1
      %s70 = scalar_select %p67, %s68, %s69
      %p73 = pneg %p67
      %p74 = scmp.eq.s32.totalorder %s32, 1
      %p75 = por %p73, %p74
      %p76 = scmp.ne.s32.totalorder %s68, %s71
      %p77 = scmp.eq.s32.totalorder %s32, 0
      %p78 = por %p76, %p77
      %p79 = scmp.ne.s32.totalorder %s68, %s71
      %p80 = scmp.eq.s32.totalorder %s37, 1
      %p81 = por %p79, %p80
      %p82 = scmp.ne.s32.totalorder %s71, %s72
      %p83 = scmp.eq.s32.totalorder %s37, 0
      %p84 = por %p82, %p83
      %p85 = scmp.ne.s32.totalorder %s71, %s72
      %p86 = scmp.eq.s32.totalorder %s38, 1
      %p87 = por %p85, %p86
      %p89 = scmp.ne.s32.totalorder %s72, %s88
      %p90 = scmp.eq.s32.totalorder %s38, 0
      %p91 = por %p89, %p90
      %s92 = ssub.s32 %s32, %s39
      %p93 = scmp.eq.s32.totalorder %s92, 0
      %s95 = sadd.s32 %s94, 1
      %s96 = scalar_select %p93, %s94, %s95
      %p99 = pneg %p93
      %p100 = scmp.eq.s32.totalorder %s32, 1
      %p101 = por %p99, %p100
      %p102 = scmp.ne.s32.totalorder %s94, %s97
      %p103 = scmp.eq.s32.totalorder %s32, 0
      %p104 = por %p102, %p103
      %p105 = scmp.ne.s32.totalorder %s94, %s97
      %p106 = scmp.eq.s32.totalorder %s37, 1
      %p107 = por %p105, %p106
      %p108 = scmp.ne.s32.totalorder %s97, %s98
      %p109 = scmp.eq.s32.totalorder %s37, 0
      %p110 = por %p108, %p109
      %p111 = scmp.ne.s32.totalorder %s97, %s98
      %p112 = scmp.eq.s32.totalorder %s38, 1
      %p113 = por %p111, %p112
      %p115 = scmp.ne.s32.totalorder %s98, %s114
      %p116 = scmp.eq.s32.totalorder %s38, 0
      %p117 = por %p115, %p116
      %s119 = sadd.s32 %s118, 1
      %p122 = scmp.eq.s32.totalorder %s32, 1
      %p123 = scmp.ne.s32.totalorder %s118, %s120
      %p124 = scmp.eq.s32.totalorder %s32, 0
      %p125 = por %p123, %p124
      %p126 = scmp.ne.s32.totalorder %s118, %s120
      %p127 = scmp.eq.s32.totalorder %s37, 1
      %p128 = por %p126, %p127
      %p129 = scmp.ne.s32.totalorder %s120, %s121
      %p130 = scmp.eq.s32.totalorder %s37, 0
      %p131 = por %p129, %p130
      %p132 = scmp.ne.s32.totalorder %s120, %s121
      %p133 = scmp.eq.s32.totalorder %s38, 1
      %p134 = por %p132, %p133
      %p136 = scmp.ne.s32.totalorder %s121, %s135
      %p137 = scmp.eq.s32.totalorder %s38, 0
      %p138 = por %p136, %p137
      %s140 = sadd.s32 %s139, 1
      %p143 = scmp.eq.s32.totalorder %s32, 1
      %p144 = scmp.ne.s32.totalorder %s139, %s141
      %p145 = scmp.eq.s32.totalorder %s32, 0
      %p146 = por %p144, %p145
      %p147 = scmp.ne.s32.totalorder %s139, %s141
      %p148 = scmp.eq.s32.totalorder %s37, 1
      %p149 = por %p147, %p148
      %p150 = scmp.ne.s32.totalorder %s141, %s142
      %p151 = scmp.eq.s32.totalorder %s37, 0
      %p152 = por %p150, %p151
      %p153 = scmp.ne.s32.totalorder %s141, %s142
      %p154 = scmp.eq.s32.totalorder %s38, 1
      %p155 = por %p153, %p154
      %p157 = scmp.ne.s32.totalorder %s142, %s156
      %p158 = scmp.eq.s32.totalorder %s38, 0
      %p159 = por %p157, %p158
      %s161 = sadd.s32 %s160, 1
      %p164 = scmp.eq.s32.totalorder %s32, 1
      %p165 = scmp.ne.s32.totalorder %s160, %s162
      %p166 = scmp.eq.s32.totalorder %s32, 0
      %p167 = por %p165, %p166
      %p168 = scmp.ne.s32.totalorder %s160, %s162
      %p169 = scmp.eq.s32.totalorder %s37, 1
      %p170 = por %p168, %p169
      %p171 = scmp.ne.s32.totalorder %s162, %s163
      %p172 = scmp.eq.s32.totalorder %s37, 0
      %p173 = por %p171, %p172
      %p174 = scmp.ne.s32.totalorder %s162, %s163
      %p175 = scmp.eq.s32.totalorder %s38, 1
      %p176 = por %p174, %p175
      %p178 = scmp.ne.s32.totalorder %s163, %s177
      %p179 = scmp.eq.s32.totalorder %s38, 0
      %p180 = por %p178, %p179
      %s182 = sadd.s32 %s181, 1
      %p185 = scmp.eq.s32.totalorder %s32, 1
      %p186 = scmp.ne.s32.totalorder %s181, %s183
      %p187 = scmp.eq.s32.totalorder %s32, 0
      %p188 = por %p186, %p187
      %p189 = scmp.ne.s32.totalorder %s181, %s183
      %p190 = scmp.eq.s32.totalorder %s37, 1
      %p191 = por %p189, %p190
      %p192 = scmp.ne.s32.totalorder %s183, %s184
      %p193 = scmp.eq.s32.totalorder %s37, 0
      %p194 = por %p192, %p193
      %p195 = scmp.ne.s32.totalorder %s183, %s184
      %p196 = scmp.eq.s32.totalorder %s38, 1
      %p197 = por %p195, %p196
      %p199 = scmp.ne.s32.totalorder %s184, %s198
      %p200 = scmp.eq.s32.totalorder %s38, 0
      %p201 = por %p199, %p200
      %s203 = sadd.s32 %s202, 1
      %p206 = scmp.eq.s32.totalorder %s32, 1
      %p207 = scmp.ne.s32.totalorder %s202, %s204
      %p208 = scmp.eq.s32.totalorder %s32, 0
      %p209 = por %p207, %p208
      %p210 = scmp.ne.s32.totalorder %s202, %s204
      %p211 = scmp.eq.s32.totalorder %s37, 1
      %p212 = por %p210, %p211
      %p213 = scmp.ne.s32.totalorder %s204, %s205
      %p214 = scmp.eq.s32.totalorder %s37, 0
      %p215 = por %p213, %p214
      %p216 = scmp.ne.s32.totalorder %s204, %s205
      %p217 = scmp.eq.s32.totalorder %s38, 1
      %p218 = por %p216, %p217
      %p220 = scmp.ne.s32.totalorder %s205, %s219
      %p221 = scmp.eq.s32.totalorder %s38, 0
      %p222 = por %p220, %p221
      %s224 = sadd.s32 %s223, 1
      %p227 = scmp.eq.s32.totalorder %s32, 1
      %p228 = scmp.ne.s32.totalorder %s223, %s225
      %p229 = scmp.eq.s32.totalorder %s32, 0
      %p230 = por %p228, %p229
      %p231 = scmp.ne.s32.totalorder %s223, %s225
      %p232 = scmp.eq.s32.totalorder %s37, 1
      %p233 = por %p231, %p232
      %p234 = scmp.ne.s32.totalorder %s225, %s226
      %p235 = scmp.eq.s32.totalorder %s37, 0
      %p236 = por %p234, %p235
      %p237 = scmp.ne.s32.totalorder %s225, %s226
      %p238 = scmp.eq.s32.totalorder %s38, 1
      %p239 = por %p237, %p238
      %p241 = scmp.ne.s32.totalorder %s226, %s240
      %p242 = scmp.eq.s32.totalorder %s38, 0
      %p243 = por %p241, %p242
      %s245 = sadd.s32 %s244, 1
      %p248 = scmp.eq.s32.totalorder %s32, 1
      %p249 = scmp.ne.s32.totalorder %s244, %s246
      %p250 = scmp.eq.s32.totalorder %s32, 0
      %p251 = por %p249, %p250
      %p252 = scmp.ne.s32.totalorder %s244, %s246
      %p253 = scmp.eq.s32.totalorder %s37, 1
      %p254 = por %p252, %p253
      %p255 = scmp.ne.s32.totalorder %s246, %s247
      %p256 = scmp.eq.s32.totalorder %s37, 0
      %p257 = por %p255, %p256
      %p258 = scmp.ne.s32.totalorder %s246, %s247
      %p259 = scmp.eq.s32.totalorder %s38, 1
      %p260 = por %p258, %p259
      %p262 = scmp.ne.s32.totalorder %s247, %s261
      %p263 = scmp.eq.s32.totalorder %s38, 0
      %p264 = por %p262, %p263
      %s265 = ssub.s32 %s32, %s39
      %p266 = scmp.eq.s32.totalorder %s265, 0
      %s268 = sadd.s32 %s267, 1
      %s269 = scalar_select %p266, %s267, %s268
      %p272 = pneg %p266
      %p273 = scmp.eq.s32.totalorder %s32, 1
      %p274 = por %p272, %p273
      %p275 = scmp.ne.s32.totalorder %s267, %s270
      %p276 = scmp.eq.s32.totalorder %s32, 0
      %p277 = por %p275, %p276
      %p278 = scmp.ne.s32.totalorder %s267, %s270
      %p279 = scmp.eq.s32.totalorder %s37, 1
      %p280 = por %p278, %p279
      %p281 = scmp.ne.s32.totalorder %s270, %s271
      %p282 = scmp.eq.s32.totalorder %s37, 0
      %p283 = por %p281, %p282
      %p284 = scmp.ne.s32.totalorder %s270, %s271
      %p285 = scmp.eq.s32.totalorder %s38, 1
      %p286 = por %p284, %p285
      %p288 = scmp.ne.s32.totalorder %s271, %s287
      %p289 = scmp.eq.s32.totalorder %s38, 0
      %p290 = por %p288, %p289
      %s291 = ssub.s32 %s32, %s39
      %p292 = scmp.eq.s32.totalorder %s291, 0
      %s294 = sadd.s32 %s293, 1
      %s295 = scalar_select %p292, %s293, %s294
      %p298 = pneg %p292
      %p299 = scmp.eq.s32.totalorder %s32, 1
      %p300 = por %p298, %p299
      %p301 = scmp.ne.s32.totalorder %s293, %s296
      %p302 = scmp.eq.s32.totalorder %s32, 0
      %p303 = por %p301, %p302
      %p304 = scmp.ne.s32.totalorder %s293, %s296
      %p305 = scmp.eq.s32.totalorder %s37, 1
      %p306 = por %p304, %p305
      %p307 = scmp.ne.s32.totalorder %s296, %s297
      %p308 = scmp.eq.s32.totalorder %s37, 0
      %p309 = por %p307, %p308
      %p310 = scmp.ne.s32.totalorder %s296, %s297
      %p311 = scmp.eq.s32.totalorder %s38, 1
      %p312 = por %p310, %p311
      %p314 = scmp.ne.s32.totalorder %s297, %s313
      %p315 = scmp.eq.s32.totalorder %s38, 0
      %p316 = por %p314, %p315
      %p317 = scmp.le.s32.totalorder 1, %s32
      %p318 = scmp.lt.s32.totalorder %s32, 3
      %p319 = pnand %p317, %p318
      %p320 = pneg %p319
      // Predicated region
      $region9: #{tpu_custom_call.1} parent=5 // pred_check
        _
      $region10: #{tpu_custom_call.1} parent=5 // pred_check_branch
        %322 = sbr.rel (%p319) target = $region12
      $region11: #{tpu_custom_call.1} parent=5 // pred_region
        %s323 = ssub.s32 %s32, 1
        // Predicated region
        $region13: #{tpu_custom_call.1} parent=11 // pred_check
          %p324 = pneg %p131
        $region14: #{tpu_custom_call.1} parent=11 // pred_check_branch
          %326 = sbr.rel (%p324) target = $region16
        $region15: #{tpu_custom_call.1} parent=11 // pred_region
          %328 = vsyncadd [#allocation10], 0
          %s329 = sshll.u32 %s3, 4
          %s330 = int_to_ptr.hbm [resolvable:$true] %s329
          %s331 = sshll.u32 [#allocation9], 4
          %s332 = int_to_ptr.vmem [resolvable:$true] %s331
          %337 = dma.hbm_to_vmem [thread:$0]  %s330, 256, %s332, [#allocation10], 64, 64, 4
        $region16: #{tpu_custom_call.1} parent=11 // pred_fallthru
          _
        // Predicated region
        $region17: #{tpu_custom_call.1} parent=11 // pred_check
          %p338 = pneg %p152
        $region18: #{tpu_custom_call.1} parent=11 // pred_check_branch
          %340 = sbr.rel (%p338) target = $region20
        $region19: #{tpu_custom_call.1} parent=11 // pred_region
          %342 = vsyncadd [#allocation10], 0
          %s343 = sshll.u32 %s4, 4
          %s344 = int_to_ptr.hbm [resolvable:$true] %s343
          %s345 = sshll.u32 [#allocation11], 4
          %s346 = int_to_ptr.vmem [resolvable:$true] %s345
          %351 = dma.hbm_to_vmem [thread:$0]  %s344, 256, %s346, [#allocation10], 64, 64, 4
        $region20: #{tpu_custom_call.1} parent=11 // pred_fallthru
          _
        // Predicated region
        $region21: #{tpu_custom_call.1} parent=11 // pred_check
          %p352 = pneg %p173
        $region22: #{tpu_custom_call.1} parent=11 // pred_check_branch
          %354 = sbr.rel (%p352) target = $region24
        $region23: #{tpu_custom_call.1} parent=11 // pred_region
          %356 = vsyncadd [#allocation13], 0
          %s357 = sshll.u32 %s5, 4
          %s358 = int_to_ptr.hbm [resolvable:$true] %s357
          %s359 = sshll.u32 [#allocation12], 4
          %s360 = int_to_ptr.vmem [resolvable:$true] %s359
          %365 = dma.hbm_to_vmem [thread:$0]  %s358, 256, %s360, [#allocation13], 64, 64, 4
        $region24: #{tpu_custom_call.1} parent=11 // pred_fallthru
          _
        // Predicated region
        $region25: #{tpu_custom_call.1} parent=11 // pred_check
          %p366 = pneg %p194
        $region26: #{tpu_custom_call.1} parent=11 // pred_check_branch
          %368 = sbr.rel (%p366) target = $region28
        $region27: #{tpu_custom_call.1} parent=11 // pred_region
          %370 = vsyncadd [#allocation13], 0
          %s371 = sshll.u32 %s6, 4
          %s372 = int_to_ptr.hbm [resolvable:$true] %s371
          %s373 = sshll.u32 [#allocation14], 4
          %s374 = int_to_ptr.vmem [resolvable:$true] %s373
          %379 = dma.hbm_to_vmem [thread:$0]  %s372, 256, %s374, [#allocation13], 64, 64, 4
        $region28: #{tpu_custom_call.1} parent=11 // pred_fallthru
          _
        // Predicated region
        $region29: #{tpu_custom_call.1} parent=11 // pred_check
          %p380 = pneg %p215
        $region30: #{tpu_custom_call.1} parent=11 // pred_check_branch
          %382 = sbr.rel (%p380) target = $region32
        $region31: #{tpu_custom_call.1} parent=11 // pred_region
          _
        $region32: #{tpu_custom_call.1} parent=11 // pred_fallthru
          _
        // Predicated region
        $region33: #{tpu_custom_call.1} parent=11 // pred_check
          %p383 = pneg %p236
        $region34: #{tpu_custom_call.1} parent=11 // pred_check_branch
          %385 = sbr.rel (%p383) target = $region36
        $region35: #{tpu_custom_call.1} parent=11 // pred_region
          _
        $region36: #{tpu_custom_call.1} parent=11 // pred_fallthru
          _
        // Predicated region
        $region37: #{tpu_custom_call.1} parent=11 // pred_check
          %p386 = pneg %p257
        $region38: #{tpu_custom_call.1} parent=11 // pred_check_branch
          %388 = sbr.rel (%p386) target = $region40
        $region39: #{tpu_custom_call.1} parent=11 // pred_region
          _
        $region40: #{tpu_custom_call.1} parent=11 // pred_fallthru
          _
      $region12: #{tpu_custom_call.1} parent=5 // pred_fallthru
        _
      %p389 = scmp.lt.s32.totalorder %s32, 2
      // Predicated region
      $region41: #{tpu_custom_call.1} parent=5 // pred_check
        %p390 = pneg %p389
      $region42: #{tpu_custom_call.1} parent=5 // pred_check_branch
        %392 = sbr.rel (%p390) target = $region44
      $region43: #{tpu_custom_call.1} parent=5 // pred_region
        // Predicated region
        $region45: #{tpu_custom_call.1} parent=43 // pred_check
          %p393 = pneg %p52
        $region46: #{tpu_custom_call.1} parent=43 // pred_check_branch
          %395 = sbr.rel (%p393) target = $region48
        $region47: #{tpu_custom_call.1} parent=43 // pred_region
          %s396 = sand.u32 %s42, 1
          %s397 = scalar_lea.sflag [#allocation4], %s396
          %s398 = sand.u32 %s42, 1
          %s399 = smul.addr %s398, 8
          %s400 = scalar_lea.vmem [#allocation3], %s399
          %402 = vsyncadd %s397, 0
          %s403 = smul.addr %s32, 8
          %s404 = scalar_lea.hbm %s0, %s403
          %s406 = sshll.u32 %s404, 4
          %s407 = int_to_ptr.hbm [resolvable:$true] %s406
          %s408 = sshll.u32 %s400, 4
          %s409 = int_to_ptr.vmem [resolvable:$true] %s408
          %411 = dma.hbm_to_vmem [thread:$0]  %s407, 128, %s409, %s397
        $region48: #{tpu_custom_call.1} parent=43 // pred_fallthru
          _
        // Predicated region
        $region49: #{tpu_custom_call.1} parent=43 // pred_check
          %p412 = pneg %p78
        $region50: #{tpu_custom_call.1} parent=43 // pred_check_branch
          %414 = sbr.rel (%p412) target = $region52
        $region51: #{tpu_custom_call.1} parent=43 // pred_region
          %s415 = sand.u32 %s32, 1
          %s416 = scalar_lea.sflag [#allocation7], %s415
          %s417 = sand.u32 %s68, 1
          %s418 = smul.addr %s417, 4
          %s419 = scalar_lea.vmem [#allocation6], %s418
          %421 = vsyncadd %s416, 0
          %s422 = smul.addr %s32, 4
          %s423 = scalar_lea.hbm %s1, %s422
          %s425 = sshll.u32 %s423, 4
          %s426 = int_to_ptr.hbm [resolvable:$true] %s425
          %s427 = sshll.u32 %s419, 4
          %s428 = int_to_ptr.vmem [resolvable:$true] %s427
          %430 = dma.hbm_to_vmem [thread:$0]  %s426, 64, %s428, %s416
        $region52: #{tpu_custom_call.1} parent=43 // pred_fallthru
          _
        // Predicated region
        $region53: #{tpu_custom_call.1} parent=43 // pred_check
          %p431 = pneg %p104
        $region54: #{tpu_custom_call.1} parent=43 // pred_check_branch
          %433 = sbr.rel (%p431) target = $region56
        $region55: #{tpu_custom_call.1} parent=43 // pred_region
          %s434 = sand.u32 %s32, 1
          %s435 = scalar_lea.sflag [#allocation7], %s434
          %s436 = sand.u32 %s94, 1
          %s437 = smul.addr %s436, 4
          %s438 = scalar_lea.vmem [#allocation8], %s437
          %440 = vsyncadd %s435, 0
          %s441 = smul.addr %s32, 4
          %s442 = scalar_lea.hbm %s2, %s441
          %s444 = sshll.u32 %s442, 4
          %s445 = int_to_ptr.hbm [resolvable:$true] %s444
          %s446 = sshll.u32 %s438, 4
          %s447 = int_to_ptr.vmem [resolvable:$true] %s446
          %449 = dma.hbm_to_vmem [thread:$0]  %s445, 64, %s447, %s435
        $region56: #{tpu_custom_call.1} parent=43 // pred_fallthru
          _
      $region44: #{tpu_custom_call.1} parent=5 // pred_fallthru
        _
      %p450 = scmp.le.s32.totalorder 1, %s32
      %p451 = scmp.lt.s32.totalorder %s32, 3
      %p452 = pnand %p450, %p451
      %p453 = pneg %p452
      // Predicated region
      $region57: #{tpu_custom_call.1} parent=5 // pred_check
        _
      $region58: #{tpu_custom_call.1} parent=5 // pred_check_branch
        %455 = sbr.rel (%p452) target = $region60
      $region59: #{tpu_custom_call.1} parent=5 // pred_region
        %s456 = ssub.s32 %s32, 1
        %s457 = sand.u32 %s45, 1
        %s458 = scalar_lea.sflag [#allocation4], %s457
        %s459 = sand.u32 %s45, 1
        %s460 = smul.addr %s459, 8
        %s461 = scalar_lea.vmem [#allocation3], %s460
        // Predicated region
        $region61: #{tpu_custom_call.1} parent=59 // pred_check
          %p462 = pneg %p58
        $region62: #{tpu_custom_call.1} parent=59 // pred_check_branch
          %464 = sbr.rel (%p462) target = $region64
        $region63: #{tpu_custom_call.1} parent=59 // pred_region
          %466 = dma.done %s458, 128
        $region64: #{tpu_custom_call.1} parent=59 // pred_fallthru
          _
        %s467 = sand.u32 %s37, 1
        %s468 = scalar_lea.sflag [#allocation7], %s467
        %s469 = sand.u32 %s71, 1
        %s470 = smul.addr %s469, 4
        %s471 = scalar_lea.vmem [#allocation6], %s470
        // Predicated region
        $region65: #{tpu_custom_call.1} parent=59 // pred_check
          %p472 = pneg %p84
        $region66: #{tpu_custom_call.1} parent=59 // pred_check_branch
          %474 = sbr.rel (%p472) target = $region68
        $region67: #{tpu_custom_call.1} parent=59 // pred_region
          %476 = dma.done %s468, 64
        $region68: #{tpu_custom_call.1} parent=59 // pred_fallthru
          _
        %s477 = sand.u32 %s37, 1
        %s478 = scalar_lea.sflag [#allocation7], %s477
        %s479 = sand.u32 %s97, 1
        %s480 = smul.addr %s479, 4
        %s481 = scalar_lea.vmem [#allocation8], %s480
        // Predicated region
        $region69: #{tpu_custom_call.1} parent=59 // pred_check
          %p482 = pneg %p110
        $region70: #{tpu_custom_call.1} parent=59 // pred_check_branch
          %484 = sbr.rel (%p482) target = $region72
        $region71: #{tpu_custom_call.1} parent=59 // pred_region
          %486 = dma.done %s478, 64
        $region72: #{tpu_custom_call.1} parent=59 // pred_fallthru
          _
        // Predicated region
        $region73: #{tpu_custom_call.1} parent=59 // pred_check
          %p487 = pneg %p131
        $region74: #{tpu_custom_call.1} parent=59 // pred_check_branch
          %489 = sbr.rel (%p487) target = $region76
        $region75: #{tpu_custom_call.1} parent=59 // pred_region
          %491 = dma.done [#allocation10], 256
        $region76: #{tpu_custom_call.1} parent=59 // pred_fallthru
          _
        // Predicated region
        $region77: #{tpu_custom_call.1} parent=59 // pred_check
          %p492 = pneg %p152
        $region78: #{tpu_custom_call.1} parent=59 // pred_check_branch
          %494 = sbr.rel (%p492) target = $region80
        $region79: #{tpu_custom_call.1} parent=59 // pred_region
          %496 = dma.done [#allocation10], 256
        $region80: #{tpu_custom_call.1} parent=59 // pred_fallthru
          _
        // Predicated region
        $region81: #{tpu_custom_call.1} parent=59 // pred_check
          %p497 = pneg %p173
        $region82: #{tpu_custom_call.1} parent=59 // pred_check_branch
          %499 = sbr.rel (%p497) target = $region84
        $region83: #{tpu_custom_call.1} parent=59 // pred_region
          %501 = dma.done [#allocation13], 256
        $region84: #{tpu_custom_call.1} parent=59 // pred_fallthru
          _
        // Predicated region
        $region85: #{tpu_custom_call.1} parent=59 // pred_check
          %p502 = pneg %p194
        $region86: #{tpu_custom_call.1} parent=59 // pred_check_branch
          %504 = sbr.rel (%p502) target = $region88
        $region87: #{tpu_custom_call.1} parent=59 // pred_region
          %506 = dma.done [#allocation13], 256
        $region88: #{tpu_custom_call.1} parent=59 // pred_fallthru
          _
        %s507 = sand.u32 %s45, 1
        %s508 = scalar_lea.sflag [#allocation4], %s507
        %s509 = sand.u32 %s45, 1
        %s510 = smul.addr %s509, 8
        %s511 = scalar_lea.vmem [#allocation3], %s510
        %p512 = pneg %p58
        %p513 = pneg %p55
        %s514 = sand.u32 %s37, 1
        %s515 = scalar_lea.sflag [#allocation7], %s514
        %s516 = sand.u32 %s71, 1
        %s517 = smul.addr %s516, 4
        %s518 = scalar_lea.vmem [#allocation6], %s517
        %p519 = pneg %p84
        %p520 = pneg %p81
        %s521 = sand.u32 %s37, 1
        %s522 = scalar_lea.sflag [#allocation7], %s521
        %s523 = sand.u32 %s97, 1
        %s524 = smul.addr %s523, 4
        %s525 = scalar_lea.vmem [#allocation8], %s524
        %p526 = pneg %p110
        %p527 = pneg %p107
        %p528 = pneg %p131
        %p529 = pneg %p128
        %p530 = pneg %p152
        %p531 = pneg %p149
        %p532 = pneg %p173
        %p533 = pneg %p170
        %p534 = pneg %p194
        %p535 = pneg %p191
        %p536 = pneg %p215
        %p537 = pneg %p212
        %p538 = pneg %p236
        %p539 = pneg %p233
        %p540 = pneg %p257
        %p541 = pneg %p254
        %p542 = pneg %p283
        %p543 = pneg %p280
        %s544 = sand.u32 %s270, 1
        %s545 = scalar_lea.sflag [#allocation5], %s544
        %s546 = sand.u32 %s270, 1
        %s547 = smul.addr %s546, 8
        %s548 = scalar_lea.vmem [#allocation15], %s547
        %p549 = pneg %p309
        %p550 = pneg %p306
        %s551 = sand.u32 %s296, 1
        %s552 = scalar_lea.sflag [#allocation17], %s551
        %s553 = sand.u32 %s296, 1
        %s554 = smul.addr %s553, 32
        %s555 = scalar_lea.vmem [#allocation16], %s554
        %v557 = vld [vmem:[%s461] sm:$0xff]
        %vm558 = vcmask 261120
        %v559 = vsel %vm558, %v557, 0.0
        %560 = vadd.xlane.f32.xlu0 %v559
        %v561 = vpop.xlane.xlu0 %560
        %v562 = vrcp.pop 32.0
        %v563 = vmul.f32 32.0, %v562
        %v564 = vsub.f32 1.0, %v563
        %v565 = vmul.f32 %v562, %v564
        %v566 = vadd.f32 %v562, %v565
        %vm567 = vweird.f32 %v562
        %v568 = vsel %vm567, %v562, %v566
        %v569 = vmul.f32 %v561, %v568
        %v570 = vsub.f32 %v557, %v569
        %v571 = vmul.f32 %v570, %v570
        %v572 = vsel %vm558, %v571, 0.0
        %573 = vadd.xlane.f32.xlu0 %v572
        %v574 = vpop.xlane.xlu0 %573
        %v575 = vmul.f32 %v574, %v568
        %v576 = vadd.f32 %v575, 1e-06
        %v577 = vrsqrt.pop %v576
        %v578 = vmul.f32 %v577, %v576
        %v579 = vmul.f32 %v578, %v577
        %v580 = vmul.f32 0.5, %v579
        %v581 = vsub.f32 1.5, %v580
        %v582 = vmul.f32 %v577, %v581
        %vm583 = vweird.f32 %v576
        %vm584 = vweird.f32 %v577
        %vm585 = vmor %vm583, %vm584
        %v586 = vsel %vm585, %v577, %v582
        %v587 = vmul.f32 %v570, %v586
        %v588 = vld [vmem:[%s8] sm:$0x1]
        %v590 = vperm.slane %v588, 0
        %v592 = vmul.f32 %v587, %v590
        %v593 = vld [vmem:[%s9] sm:$0x1]
        %v595 = vperm.slane %v593, 0
        %v597 = vadd.f32 %v592, %v595
        %v598 = vpack.c.bf16 %v597, %v597
        %v599 = vld [vmem:[%s471] sm:$0xf]
        %v600 = vld [vmem:[%s481] sm:$0xf]
        %v601 = vld [vmem:[#allocation9] sm:$0xf]
        %v602 = vld [vmem:[#allocation9 + $0x4] sm:$0xf]
        %v603 = vld [vmem:[#allocation9 + $0x8] sm:$0xf]
        %v604 = vld [vmem:[#allocation9 + $0xc] sm:$0xf]
        %v609 = vunpack.c.l.b16 %v601
        %v610 = vunpack.c.l.b16 %v602
        %v611 = vunpack.c.l.b16 %v603
        %v612 = vunpack.c.l.b16 %v604
        %v613 = vpack.c.b16 %v610, %v609
        %v614 = vpack.c.b16 %v612, %v611
        %v618 = vsel %vm558, %v598, 0
        %620 = vmatpush.bf16.msra.mxu0 0
        %621 = vmatpush.bf16.msra.mxu0 0
        %622 = vmatpush.bf16.msra.mxu0 0
        %623 = vmatpush.bf16.msra.mxu0 0
        %624 = vmatpush.bf16.msra.mxu0 0
        %625 = vmatpush.bf16.msra.mxu0 0
        %626 = vmatpush.bf16.msra.mxu0 %v614
        %627 = vmatpush.bf16.msra.mxu0 %v613
        %628 = vmatmul.bf16.gmra.mxu0 %v618
        %v629 = vpop.f32.mrf.mxu0
        %v630 = vadd.f32 0.0, %v629
        %v631 = vpop.f32.mrf.mxu0
        %632 = vdwg.mxu0
        %v633 = vld [vmem:[#allocation11] sm:$0xf]
        %v634 = vld [vmem:[#allocation11 + $0x4] sm:$0xf]
        %v635 = vld [vmem:[#allocation11 + $0x8] sm:$0xf]
        %v636 = vld [vmem:[#allocation11 + $0xc] sm:$0xf]
        %v641 = vunpack.c.l.b16 %v633
        %v642 = vunpack.c.l.b16 %v634
        %v643 = vunpack.c.l.b16 %v635
        %v644 = vunpack.c.l.b16 %v636
        %v645 = vpack.c.b16 %v642, %v641
        %v646 = vpack.c.b16 %v644, %v643
        %v650 = vsel %vm558, %v599, 0
        %652 = vmatpush.bf16.msra.mxu0 0
        %653 = vmatpush.bf16.msra.mxu0 0
        %654 = vmatpush.bf16.msra.mxu0 0
        %655 = vmatpush.bf16.msra.mxu0 0
        %656 = vmatpush.bf16.msra.mxu0 0
        %657 = vmatpush.bf16.msra.mxu0 0
        %658 = vmatpush.bf16.msra.mxu0 %v646
        %659 = vmatpush.bf16.msra.mxu0 %v645
        %660 = vmatmul.bf16.gmra.mxu0 %v650
        %v661 = vpop.f32.mrf.mxu0
        %v662 = vadd.f32 0.0, %v661
        %v663 = vpop.f32.mrf.mxu0
        %664 = vdwg.mxu0
        %v665 = vld [vmem:[#allocation12] sm:$0xf]
        %v666 = vld [vmem:[#allocation12 + $0x4] sm:$0xf]
        %v667 = vld [vmem:[#allocation12 + $0x8] sm:$0xf]
        %v668 = vld [vmem:[#allocation12 + $0xc] sm:$0xf]
        %v673 = vunpack.c.l.b16 %v665
        %v674 = vunpack.c.l.b16 %v666
        %v675 = vunpack.c.l.b16 %v667
        %v676 = vunpack.c.l.b16 %v668
        %v677 = vpack.c.b16 %v674, %v673
        %v678 = vpack.c.b16 %v676, %v675
        %v682 = vsel %vm558, %v600, 0
        %684 = vmatpush.bf16.msra.mxu0 0
        %685 = vmatpush.bf16.msra.mxu0 0
        %686 = vmatpush.bf16.msra.mxu0 0
        %687 = vmatpush.bf16.msra.mxu0 0
        %688 = vmatpush.bf16.msra.mxu0 0
        %689 = vmatpush.bf16.msra.mxu0 0
        %690 = vmatpush.bf16.msra.mxu0 %v678
        %691 = vmatpush.bf16.msra.mxu0 %v677
        %692 = vmatmul.bf16.gmra.mxu0 %v682
        %v693 = vpop.f32.mrf.mxu0
        %v694 = vadd.f32 0.0, %v693
        %v695 = vpop.f32.mrf.mxu0
        %696 = vdwg.mxu0
        %v697 = vpack.c.bf16 %v630, %v630
        %v698 = vpack.c.bf16 %v662, %v662
        %v699 = vpack.c.bf16 %v694, %v694
        %vm700 = vcmask 64512
        %v702 = vsel %vm700, %v697, 0
        %v705 = vsel %vm700, %v698, 0
        %707 = vmatpush.bf16.xpose.msra.mxu0 0
        %708 = vmatpush.bf16.xpose.msra.mxu0 0
        %709 = vmatpush.bf16.xpose.msra.mxu0 0
        %710 = vmatpush.bf16.xpose.msra.mxu0 0
        %711 = vmatpush.bf16.xpose.msra.mxu0 0
        %712 = vmatpush.bf16.xpose.msra.mxu0 0
        %713 = vmatpush.bf16.xpose.msra.mxu0 0
        %714 = vmatpush.bf16.xpose.msra.mxu0 %v705
        %715 = vmatmul.bf16.gmra.mxu0 %v702
        %v716 = vpop.f32.mrf.mxu0
        %v717 = vadd.f32 0.0, %v716
        %v718 = vpop.f32.mrf.mxu0
        %719 = vdwg.mxu0
        %v720 = vsel %vm700, %v717, -inf
        %721 = vmax.xlane.f32.xlu0 %v720
        %v722 = vpop.xlane.xlu0 %721
        %v723 = vsub.f32 %v717, %v722
        %v724 = vmul.f32 %v723, 1.442695
        %v725 = vpow.pop %v724
        %v726 = vsel %vm700, %v725, 0.0
        %727 = vadd.xlane.f32.xlu0 %v726
        %v728 = vpop.xlane.xlu0 %727
        %v729 = vrcp.pop %v728
        %v730 = vmul.f32 %v728, %v729
        %v731 = vsub.f32 1.0, %v730
        %v732 = vmul.f32 %v729, %v731
        %v733 = vadd.f32 %v729, %v732
        %vm734 = vweird.f32 %v728
        %vm735 = vweird.f32 %v729
        %vm736 = vmor %vm734, %vm735
        %v737 = vsel %vm736, %v729, %v733
        %v738 = vand.u32 2147483647, %v728
        %vm739 = vcmp.eq.f32.partialorder %v738, 8.507059e+37
        %v740 = vand.u32 %v728, 2147483648
        %v741 = vor.u32 1.1754944e-38, %v740
        %v742 = vsel %vm739, %v741, %v737
        %v743 = vmul.f32 1.0, %v742
        %v744 = vmul.f32 %v725, %v743
        %745 = vst.msk [vmem:[%s555] sm:$0xff] %vm700, %v744
        %v746 = vpack.c.bf16 %v744, %v744
        %v748 = vsel %vm700, %v746, 0
        %vm750 = vcmask 1043456
        %v752 = vsel %vm750, %v699, 0
        %754 = vmatpush.bf16.msra.mxu0 0
        %755 = vmatpush.bf16.msra.mxu0 0
        %756 = vmatpush.bf16.msra.mxu0 0
        %757 = vmatpush.bf16.msra.mxu0 0
        %758 = vmatpush.bf16.msra.mxu0 0
        %759 = vmatpush.bf16.msra.mxu0 0
        %760 = vmatpush.bf16.msra.mxu0 0
        %761 = vmatpush.bf16.msra.mxu0 %v752
        %762 = vmatmul.bf16.gmra.mxu0 %v748
        %v763 = vpop.f32.mrf.mxu0
        %v764 = vadd.f32 0.0, %v763
        %v765 = vpop.f32.mrf.mxu0
        %766 = vdwg.mxu0
        %v767 = vpack.c.bf16 %v764, %v764
        %vm768 = vcmask 60416
        %769 = vst.msk [vmem:[#allocation2] sm:$0xf] %vm768, %v767
        %v771 = vunpack.c.l.b16 %v697
        %v772 = vpack.c.b16 %v771, %v771
        %773 = vrot.lane.b32.xlu0 %v772, 120
        %v774 = vpop.permute.xlu0 %773
        %v776 = vunpack.c.l.b16 %v698
        %v777 = vpack.c.b16 %v776, %v776
        %778 = vrot.lane.b32.xlu0 %v777, 120
        %v779 = vpop.permute.xlu0 %778
        %v781 = vsel %vm700, %v774, 0
        %v784 = vsel %vm700, %v779, 0
        %786 = vmatpush.bf16.xpose.msra.mxu0 0
        %787 = vmatpush.bf16.xpose.msra.mxu0 0
        %788 = vmatpush.bf16.xpose.msra.mxu0 0
        %789 = vmatpush.bf16.xpose.msra.mxu0 0
        %790 = vmatpush.bf16.xpose.msra.mxu0 0
        %791 = vmatpush.bf16.xpose.msra.mxu0 0
        %792 = vmatpush.bf16.xpose.msra.mxu0 0
        %793 = vmatpush.bf16.xpose.msra.mxu0 %v784
        %794 = vmatmul.bf16.gmra.mxu0 %v781
        %v795 = vpop.f32.mrf.mxu0
        %v796 = vadd.f32 0.0, %v795
        %v797 = vpop.f32.mrf.mxu0
        %798 = vdwg.mxu0
        %v799 = vsel %vm700, %v796, -inf
        %800 = vmax.xlane.f32.xlu0 %v799
        %v801 = vpop.xlane.xlu0 %800
        %v802 = vsub.f32 %v796, %v801
        %v803 = vmul.f32 %v802, 1.442695
        %v804 = vpow.pop %v803
        %v805 = vsel %vm700, %v804, 0.0
        %806 = vadd.xlane.f32.xlu0 %v805
        %v807 = vpop.xlane.xlu0 %806
        %v808 = vrcp.pop %v807
        %v809 = vmul.f32 %v807, %v808
        %v810 = vsub.f32 1.0, %v809
        %v811 = vmul.f32 %v808, %v810
        %v812 = vadd.f32 %v808, %v811
        %vm813 = vweird.f32 %v807
        %vm814 = vweird.f32 %v808
        %vm815 = vmor %vm813, %vm814
        %v816 = vsel %vm815, %v808, %v812
        %v817 = vand.u32 2147483647, %v807
        %vm818 = vcmp.eq.f32.partialorder %v817, 8.507059e+37
        %v819 = vand.u32 %v807, 2147483648
        %v820 = vor.u32 1.1754944e-38, %v819
        %v821 = vsel %vm818, %v820, %v816
        %v822 = vmul.f32 1.0, %v821
        %v823 = vmul.f32 %v804, %v822
        %s824 = scalar_lea.vmem %s555, 8 [#allocation16]
        %825 = vst.msk [vmem:[%s824] sm:$0xff] %vm700, %v823
        %v826 = vpack.c.bf16 %v823, %v823
        %v828 = vunpack.c.l.b16 %v699
        %v829 = vpack.c.b16 %v828, %v828
        %830 = vrot.lane.b32.xlu0 %v829, 120
        %v831 = vpop.permute.xlu0 %830
        %v833 = vsel %vm700, %v826, 0
        %v836 = vsel %vm750, %v831, 0
        %838 = vmatpush.bf16.msra.mxu0 0
        %839 = vmatpush.bf16.msra.mxu0 0
        %840 = vmatpush.bf16.msra.mxu0 0
        %841 = vmatpush.bf16.msra.mxu0 0
        %842 = vmatpush.bf16.msra.mxu0 0
        %843 = vmatpush.bf16.msra.mxu0 0
        %844 = vmatpush.bf16.msra.mxu0 0
        %845 = vmatpush.bf16.msra.mxu0 %v836
        %846 = vmatmul.bf16.gmra.mxu0 %v833
        %v847 = vpop.f32.mrf.mxu0
        %v848 = vadd.f32 0.0, %v847
        %v849 = vpop.f32.mrf.mxu0
        %850 = vdwg.mxu0
        %v851 = vpack.c.bf16 %v848, %v848
        %853 = vrot.lane.b32.xlu0 %v851, 8
        %v854 = vpop.permute.xlu0 %853
        %vm856 = vcmask 126016
        %857 = vst.msk [vmem:[#allocation2] sm:$0xf] %vm856, %v854
        %858 = vrot.lane.b32.xlu0 %v772, 112
        %v859 = vpop.permute.xlu0 %858
        %860 = vrot.lane.b32.xlu0 %v777, 112
        %v861 = vpop.permute.xlu0 %860
        %v863 = vsel %vm700, %v859, 0
        %v866 = vsel %vm700, %v861, 0
        %868 = vmatpush.bf16.xpose.msra.mxu0 0
        %869 = vmatpush.bf16.xpose.msra.mxu0 0
        %870 = vmatpush.bf16.xpose.msra.mxu0 0
        %871 = vmatpush.bf16.xpose.msra.mxu0 0
        %872 = vmatpush.bf16.xpose.msra.mxu0 0
        %873 = vmatpush.bf16.xpose.msra.mxu0 0
        %874 = vmatpush.bf16.xpose.msra.mxu0 0
        %875 = vmatpush.bf16.xpose.msra.mxu0 %v866
        %876 = vmatmul.bf16.gmra.mxu0 %v863
        %v877 = vpop.f32.mrf.mxu0
        %v878 = vadd.f32 0.0, %v877
        %v879 = vpop.f32.mrf.mxu0
        %880 = vdwg.mxu0
        %v881 = vsel %vm700, %v878, -inf
        %882 = vmax.xlane.f32.xlu0 %v881
        %v883 = vpop.xlane.xlu0 %882
        %v884 = vsub.f32 %v878, %v883
        %v885 = vmul.f32 %v884, 1.442695
        %v886 = vpow.pop %v885
        %v887 = vsel %vm700, %v886, 0.0
        %888 = vadd.xlane.f32.xlu0 %v887
        %v889 = vpop.xlane.xlu0 %888
        %v890 = vrcp.pop %v889
        %v891 = vmul.f32 %v889, %v890
        %v892 = vsub.f32 1.0, %v891
        %v893 = vmul.f32 %v890, %v892
        %v894 = vadd.f32 %v890, %v893
        %vm895 = vweird.f32 %v889
        %vm896 = vweird.f32 %v890
        %vm897 = vmor %vm895, %vm896
        %v898 = vsel %vm897, %v890, %v894
        %v899 = vand.u32 2147483647, %v889
        %vm900 = vcmp.eq.f32.partialorder %v899, 8.507059e+37
        %v901 = vand.u32 %v889, 2147483648
        %v902 = vor.u32 1.1754944e-38, %v901
        %v903 = vsel %vm900, %v902, %v898
        %v904 = vmul.f32 1.0, %v903
        %v905 = vmul.f32 %v886, %v904
        %s906 = scalar_lea.vmem %s555, 16 [#allocation16]
        %907 = vst.msk [vmem:[%s906] sm:$0xff] %vm700, %v905
        %v908 = vpack.c.bf16 %v905, %v905
        %909 = vrot.lane.b32.xlu0 %v829, 112
        %v910 = vpop.permute.xlu0 %909
        %v912 = vsel %vm700, %v908, 0
        %v915 = vsel %vm750, %v910, 0
        %917 = vmatpush.bf16.msra.mxu0 0
        %918 = vmatpush.bf16.msra.mxu0 0
        %919 = vmatpush.bf16.msra.mxu0 0
        %920 = vmatpush.bf16.msra.mxu0 0
        %921 = vmatpush.bf16.msra.mxu0 0
        %922 = vmatpush.bf16.msra.mxu0 0
        %923 = vmatpush.bf16.msra.mxu0 0
        %924 = vmatpush.bf16.msra.mxu0 %v915
        %925 = vmatmul.bf16.gmra.mxu0 %v912
        %v926 = vpop.f32.mrf.mxu0
        %v927 = vadd.f32 0.0, %v926
        %v928 = vpop.f32.mrf.mxu0
        %929 = vdwg.mxu0
        %v930 = vpack.c.bf16 %v927, %v927
        %932 = vrot.lane.b32.xlu0 %v930, 16
        %v933 = vpop.permute.xlu0 %932
        %vm935 = vcmask 191616
        %936 = vst.msk [vmem:[#allocation2] sm:$0xf] %vm935, %v933
        %937 = vrot.lane.b32.xlu0 %v772, 104
        %v938 = vpop.permute.xlu0 %937
        %939 = vrot.lane.b32.xlu0 %v777, 104
        %v940 = vpop.permute.xlu0 %939
        %v942 = vsel %vm700, %v938, 0
        %v945 = vsel %vm700, %v940, 0
        %947 = vmatpush.bf16.xpose.msra.mxu0 0
        %948 = vmatpush.bf16.xpose.msra.mxu0 0
        %949 = vmatpush.bf16.xpose.msra.mxu0 0
        %950 = vmatpush.bf16.xpose.msra.mxu0 0
        %951 = vmatpush.bf16.xpose.msra.mxu0 0
        %952 = vmatpush.bf16.xpose.msra.mxu0 0
        %953 = vmatpush.bf16.xpose.msra.mxu0 0
        %954 = vmatpush.bf16.xpose.msra.mxu0 %v945
        %955 = vmatmul.bf16.gmra.mxu0 %v942
        %v956 = vpop.f32.mrf.mxu0
        %v957 = vadd.f32 0.0, %v956
        %v958 = vpop.f32.mrf.mxu0
        %959 = vdwg.mxu0
        %v960 = vsel %vm700, %v957, -inf
        %961 = vmax.xlane.f32.xlu0 %v960
        %v962 = vpop.xlane.xlu0 %961
        %v963 = vsub.f32 %v957, %v962
        %v964 = vmul.f32 %v963, 1.442695
        %v965 = vpow.pop %v964
        %v966 = vsel %vm700, %v965, 0.0
        %967 = vadd.xlane.f32.xlu0 %v966
        %v968 = vpop.xlane.xlu0 %967
        %v969 = vrcp.pop %v968
        %v970 = vmul.f32 %v968, %v969
        %v971 = vsub.f32 1.0, %v970
        %v972 = vmul.f32 %v969, %v971
        %v973 = vadd.f32 %v969, %v972
        %vm974 = vweird.f32 %v968
        %vm975 = vweird.f32 %v969
        %vm976 = vmor %vm974, %vm975
        %v977 = vsel %vm976, %v969, %v973
        %v978 = vand.u32 2147483647, %v968
        %vm979 = vcmp.eq.f32.partialorder %v978, 8.507059e+37
        %v980 = vand.u32 %v968, 2147483648
        %v981 = vor.u32 1.1754944e-38, %v980
        %v982 = vsel %vm979, %v981, %v977
        %v983 = vmul.f32 1.0, %v982
        %v984 = vmul.f32 %v965, %v983
        %s985 = scalar_lea.vmem %s555, 24 [#allocation16]
        %986 = vst.msk [vmem:[%s985] sm:$0xff] %vm700, %v984
        %v987 = vpack.c.bf16 %v984, %v984
        %988 = vrot.lane.b32.xlu0 %v829, 104
        %v989 = vpop.permute.xlu0 %988
        %v991 = vsel %vm700, %v987, 0
        %v994 = vsel %vm750, %v989, 0
        %996 = vmatpush.bf16.msra.mxu0 0
        %997 = vmatpush.bf16.msra.mxu0 0
        %998 = vmatpush.bf16.msra.mxu0 0
        %999 = vmatpush.bf16.msra.mxu0 0
        %1000 = vmatpush.bf16.msra.mxu0 0
        %1001 = vmatpush.bf16.msra.mxu0 0
        %1002 = vmatpush.bf16.msra.mxu0 0
        %1003 = vmatpush.bf16.msra.mxu0 %v994
        %1004 = vmatmul.bf16.gmra.mxu0 %v991
        %v1005 = vpop.f32.mrf.mxu0
        %v1006 = vadd.f32 0.0, %v1005
        %v1007 = vpop.f32.mrf.mxu0
        %1008 = vdwg.mxu0
        %v1009 = vpack.c.bf16 %v1006, %v1006
        %1011 = vrot.lane.b32.xlu0 %v1009, 24
        %v1012 = vpop.permute.xlu0 %1011
        %vm1014 = vcmask 257216
        %1015 = vst.msk [vmem:[#allocation2] sm:$0xf] %vm1014, %v1012
        %v1016 = vld [vmem:[#allocation2] sm:$0xf]
        %v1017 = vld [vmem:[#allocation14] sm:$0xf]
        %v1018 = vld [vmem:[#allocation14 + $0x4] sm:$0xf]
        %v1019 = vld [vmem:[#allocation14 + $0x8] sm:$0xf]
        %v1020 = vld [vmem:[#allocation14 + $0xc] sm:$0xf]
        %v1021 = vld [vmem:[%s7] sm:$0x1]
        %v1023 = vperm.slane %v1021, 0
        %v1029 = vunpack.c.l.b16 %v1017
        %v1030 = vunpack.c.l.b16 %v1018
        %v1031 = vunpack.c.l.b16 %v1019
        %v1032 = vunpack.c.l.b16 %v1020
        %v1033 = vpack.c.b16 %v1030, %v1029
        %v1034 = vpack.c.b16 %v1032, %v1031
        %v1038 = vsel %vm558, %v1016, 0
        %1040 = vmatpush.bf16.msra.mxu0 0
        %1041 = vmatpush.bf16.msra.mxu0 0
        %1042 = vmatpush.bf16.msra.mxu0 0
        %1043 = vmatpush.bf16.msra.mxu0 0
        %1044 = vmatpush.bf16.msra.mxu0 0
        %1045 = vmatpush.bf16.msra.mxu0 0
        %1046 = vmatpush.bf16.msra.mxu0 %v1034
        %1047 = vmatpush.bf16.msra.mxu0 %v1033
        %1048 = vmatmul.bf16.gmra.mxu0 %v1038
        %v1049 = vpop.f32.mrf.mxu0
        %v1050 = vadd.f32 %v1023, %v1049
        %v1051 = vpop.f32.mrf.mxu0
        %1052 = vdwg.mxu0
        %v1053 = vld [vmem:[%s461] sm:$0xff]
        %v1054 = vadd.f32 %v1050, %v1053
        %1055 = vst.msk [vmem:[%s548] sm:$0xff] %vm558, %v1054
        %s1056 = sand.u32 %s270, 1
        %s1057 = scalar_lea.sflag [#allocation5], %s1056
        %s1058 = sand.u32 %s270, 1
        %s1059 = smul.addr %s1058, 8
        %s1060 = scalar_lea.vmem [#allocation15], %s1059
        %s1061 = sand.u32 %s296, 1
        %s1062 = scalar_lea.sflag [#allocation17], %s1061
        %s1063 = sand.u32 %s296, 1
        %s1064 = smul.addr %s1063, 32
        %s1065 = scalar_lea.vmem [#allocation16], %s1064
        // Predicated region
        $region89: #{tpu_custom_call.1} parent=59 // pred_check
          %p1066 = pneg %p280
        $region90: #{tpu_custom_call.1} parent=59 // pred_check_branch
          %1068 = sbr.rel (%p1066) target = $region92
        $region91: #{tpu_custom_call.1} parent=59 // pred_region
          %1070 = vsyncadd %s1057, 0
          %s1071 = smul.addr %s37, 8
          %s1072 = scalar_lea.hbm %s10, %s1071
          %s1074 = sshll.u32 %s1060, 4
          %s1075 = int_to_ptr.vmem [resolvable:$true] %s1074
          %s1076 = sshll.u32 %s1072, 4
          %s1077 = int_to_ptr.hbm [resolvable:$true] %s1076
          %1079 = dma.vmem_to_hbm [thread:$0]  %s1075, 128, %s1077, %s1057
        $region92: #{tpu_custom_call.1} parent=59 // pred_fallthru
          _
        // Predicated region
        $region93: #{tpu_custom_call.1} parent=59 // pred_check
          %p1080 = pneg %p306
        $region94: #{tpu_custom_call.1} parent=59 // pred_check_branch
          %1082 = sbr.rel (%p1080) target = $region96
        $region95: #{tpu_custom_call.1} parent=59 // pred_region
          %1084 = vsyncadd %s1062, 0
          %s1085 = smul.addr %s37, 4
          %s1086 = smul.addr %s1085, 8
          %s1087 = scalar_lea.hbm %s11, %s1086
          %s1088 = sshll.u32 %s1065, 4
          %s1089 = int_to_ptr.vmem [resolvable:$true] %s1088
          %s1090 = sshll.u32 %s1087, 4
          %s1091 = int_to_ptr.hbm [resolvable:$true] %s1090
          %1096 = dma.vmem_to_hbm [thread:$0]  %s1089, 512, %s1091, %s1062, 128, 128, 8
        $region96: #{tpu_custom_call.1} parent=59 // pred_fallthru
          _
      $region60: #{tpu_custom_call.1} parent=5 // pred_fallthru
        _
      %p1097 = scmp.le.s32.totalorder 2, %s32
      // Predicated region
      $region97: #{tpu_custom_call.1} parent=5 // pred_check
        %p1098 = pneg %p1097
      $region98: #{tpu_custom_call.1} parent=5 // pred_check_branch
        %1100 = sbr.rel (%p1098) target = $region100
      $region99: #{tpu_custom_call.1} parent=5 // pred_region
        %s1101 = ssub.s32 %s32, 2
        // Predicated region
        $region101: #{tpu_custom_call.1} parent=99 // pred_check
          %p1102 = pneg %p286
        $region102: #{tpu_custom_call.1} parent=99 // pred_check_branch
          %1104 = sbr.rel (%p1102) target = $region104
        $region103: #{tpu_custom_call.1} parent=99 // pred_region
          %s1105 = sand.u32 %s271, 1
          %s1106 = scalar_lea.sflag [#allocation5], %s1105
          %s1107 = sand.u32 %s271, 1
          %s1108 = smul.addr %s1107, 8
          %s1109 = scalar_lea.vmem [#allocation15], %s1108
          %1111 = dma.done %s1106, 128
        $region104: #{tpu_custom_call.1} parent=99 // pred_fallthru
          _
        // Predicated region
        $region105: #{tpu_custom_call.1} parent=99 // pred_check
          %p1112 = pneg %p312
        $region106: #{tpu_custom_call.1} parent=99 // pred_check_branch
          %1114 = sbr.rel (%p1112) target = $region108
        $region107: #{tpu_custom_call.1} parent=99 // pred_region
          %s1115 = sand.u32 %s297, 1
          %s1116 = scalar_lea.sflag [#allocation17], %s1115
          %s1117 = sand.u32 %s297, 1
          %s1118 = smul.addr %s1117, 32
          %s1119 = scalar_lea.vmem [#allocation16], %s1118
          %1121 = dma.done %s1116, 512
        $region108: #{tpu_custom_call.1} parent=99 // pred_fallthru
          _
      $region100: #{tpu_custom_call.1} parent=5 // pred_fallthru
        _
    $region6: #{tpu_custom_call.1} parent=1 // loop_footer
      %s36 = sadd.s32 1, %s32
    $region7: #{tpu_custom_call.1} parent=1 // loop_footer_branch
      %31 = sbr.rel target = $region3
    $region8: #{tpu_custom_call.1} parent=1 // loop_exit
      _
    %1122 = vsyncpa [#allocation4], 1
    %s1123 = scalar_lea.sflag [#allocation4], 1
    %1124 = vsyncpa %s1123, 1
    %1125 = vsyncpa [#allocation7], 1
    %s1126 = scalar_lea.sflag [#allocation7], 1
    %1127 = vsyncpa %s1126, 1
    %1128 = vsyncpa [#allocation10], 1
    %1129 = vsyncpa [#allocation13], 1
    %1130 = vsyncpa [#allocation5], 1
    %s1131 = scalar_lea.sflag [#allocation5], 1
    %1132 = vsyncpa %s1131, 1
    %1133 = vsyncpa [#allocation17], 1
    %s1134 = scalar_lea.sflag [#allocation17], 1
    %1135 = vsyncpa %s1134, 1

</llo_original>
